<compile_context>
chip_gen: v5e
topology: v5e:2x2
jax: 0.10.0
libtpu: 0.0.40
codegen_flags: <defaults>
</compile_context>

<pallas_src>
import jax
import jax.numpy as jnp
from jax import lax
from jax.experimental import pallas as pl
from jax.experimental.pallas import tpu as pltpu


def _bottleneck_kernel(x_ref, w1_ref, b1_ref, w2_ref, b2_ref, w3_ref, b3_ref, o_ref):
    # x_ref : (1, H, W, Cin)  f32  -- full image of this batch element (resident over h)
    # w1_ref: (Cin, P)        bf16 (bn1 scale folded)
    # w2_ref: (3, 3P, P)      bf16 (bn2 scale folded; [ky, kx*P+i, o])
    # w3_ref: (P, Cout)       bf16 (bn3 scale folded)
    # b*_ref: (1, C)          f32
    # o_ref : (1, TH, W, Cout)
    _, H, W, Cin = x_ref.shape
    _, TH, _, Cout = o_ref.shape
    P = w1_ref.shape[1]
    L = (TH + 2) * W

    h = pl.program_id(1)
    r0 = pl.multiple_of(h * TH, TH)                  # first output row of this tile

    # ---- conv1 (1x1) + bn1 + relu over TH rows + 1-row halo: ONE MXU dot ----
    top = jnp.maximum(r0 - 1, 0)
    bot = jnp.minimum(r0 + TH, H - 1)
    cast = lambda a: a.astype(jnp.bfloat16)
    xwin = jnp.concatenate(
        [cast(x_ref[:, pl.ds(top, 1), :, :].reshape(1, W, Cin)),
         cast(x_ref[:, pl.ds(r0, TH), :, :].reshape(TH, W, Cin)),
         cast(x_ref[:, pl.ds(bot, 1), :, :].reshape(1, W, Cin))],
        axis=0)                                       # (TH+2, W, Cin) bf16
    y1 = jnp.dot(xwin.reshape(L, Cin), w1_ref[...],
                 preferred_element_type=jnp.float32)  # (L, P) f32
    y1 = jnp.maximum(y1 + b1_ref[...], 0.0).reshape(TH + 2, W, P)

    # Zero the halo rows that fall outside the image: they are conv2's zero padding.
    grow = r0 - 1 + lax.broadcasted_iota(jnp.int32, (TH + 2, 1, 1), 0)
    y1 = jnp.where((grow >= 0) & (grow < H), y1, 0.0)

    # ---- conv2 (3x3, stride 1, pad 1) + bn2 + relu ----
    # Column +/-1 taps via sublane roll of the flattened (rows*W, P) array; the
    # wrap-around elements land exactly on the masked first/last columns.
    yf = y1.reshape(L, P)
    cidx = lax.broadcasted_iota(jnp.int32, (1, W, 1), 1)
    y_m1 = jnp.where(cidx == 0, 0.0,
                     pltpu.roll(yf, shift=1, axis=0).reshape(TH + 2, W, P))
    y_p1 = jnp.where(cidx == W - 1, 0.0,
                     pltpu.roll(yf, shift=L - 1, axis=0).reshape(TH + 2, W, P))
    # Fuse the 3 kx taps along K: 3 dots of K=3P instead of 9 dots of K=P.
    taps = jnp.concatenate([y_m1, y1, y_p1], axis=-1).astype(jnp.bfloat16)  # (TH+2, W, 3P)

    acc = jnp.zeros((TH * W, P), jnp.float32)
    for ky in range(3):                               # aligned leading-axis slices
        lhs = taps[ky:ky + TH].reshape(TH * W, 3 * P)
        acc = acc + jnp.dot(lhs, w2_ref[ky], preferred_element_type=jnp.float32)
    y2 = jnp.maximum(acc + b2_ref[...], 0.0).astype(jnp.bfloat16)           # (TH*W, P)

    # ---- conv3 (1x1) + bn3 + identity add + relu ----
    y3 = jnp.dot(y2, w3_ref[...], preferred_element_type=jnp.float32) + b3_ref[...]
    x_id = x_ref[:, pl.ds(r0, TH), :, :].reshape(TH * W, Cin)               # identity in f32
    out = jnp.maximum(y3 + x_id, 0.0)
    o_ref[...] = out.reshape(1, TH, W, Cout).astype(o_ref.dtype)


def bottleneck_pallas(x_nchw, params, *, row_tile=16):
    """x_nchw: (N, C, H, W) float32. Returns (N, C, H, W)."""
    w1, s1, b1, w2, s2, b2, w3, s3, b3 = params
    P = w1.shape[1]

    # Fold BN scales into the conv output channels (one-time, host side); bf16 weights.
    w1f = (w1 * s1).astype(jnp.bfloat16)                      # (Cin, P)
    w2f = (w2 * s2[0]).astype(jnp.bfloat16).reshape(3, 3 * P, P)  # (3, 3P, P): [ky, kx*P+i, o]
    w3f = (w3 * s3).astype(jnp.bfloat16)                      # (P, Cout)

    x = jnp.transpose(x_nchw, (0, 2, 3, 1)).astype(jnp.float32)   # NCHW -> NHWC
    N, H, W, Cin = x.shape
    Cout = w3f.shape[1]
    assert Cout == Cin, "downsample=None requires inplanes == planes*4"

    if H % row_tile == 0:
        TH = row_tile
    elif H % 8 == 0:
        TH = 8
    else:
        TH = H
    HT = H // TH

    def full(a):
        nd = a.ndim
        return pl.BlockSpec(a.shape, lambda n, h: (0,) * nd)

    out = pl.pallas_call(
        _bottleneck_kernel,
        out_shape=jax.ShapeDtypeStruct((N, H, W, Cout), jnp.float32),
        grid_spec=pltpu.PrefetchScalarGridSpec(
            num_scalar_prefetch=0,
            grid=(N, HT),
            in_specs=[
                # Full image, resident across the h-tiles of one batch element.
                pl.BlockSpec((1, H, W, Cin), lambda n, h: (n, 0, 0, 0)),
                full(w1f), full(b1),
                full(w2f), full(b2),
                full(w3f), full(b3),
            ],
            out_specs=pl.BlockSpec((1, TH, W, Cout), lambda n, h: (n, h, 0, 0)),
        ),
        compiler_params=pltpu.CompilerParams(
            # N is the core-parallel (megacore) axis; h reuses the resident x block.
            dimension_semantics=("parallel", "arbitrary"),
            vmem_limit_bytes=32 * 1024 * 1024,
        ),
    )(x, w1f, b1, w2f, b2, w3f, b3)

    return jnp.transpose(out, (0, 3, 1, 2))                   # NHWC -> NCHW


def _fold_bn(gamma, beta, mean, var, eps=1e-5):
    scale = gamma / jnp.sqrt(var + eps)
    bias = beta - mean * scale
    return scale[None, :], bias[None, :]                      # (1, C)


def make_params(key, inplanes, planes):
    exp = 4
    ks = jax.random.split(key, 6)
    w1 = jax.random.normal(ks[0], (inplanes, planes), jnp.float32) * 0.1
    w2 = jax.random.normal(ks[1], (3, 3, planes, planes), jnp.float32) * 0.1   # HWIO
    w3 = jax.random.normal(ks[2], (planes, planes * exp), jnp.float32) * 0.1

    def bn(k, c):
        kg, kb, km, kv = jax.random.split(k, 4)
        g = 1.0 + 0.1 * jax.random.normal(kg, (c,), jnp.float32)
        b = 0.1 * jax.random.normal(kb, (c,), jnp.float32)
        m = 0.1 * jax.random.normal(km, (c,), jnp.float32)
        v = 0.5 + jnp.abs(jax.random.normal(kv, (c,), jnp.float32))
        return _fold_bn(g, b, m, v)

    s1, b1 = bn(ks[3], planes)
    s2, b2 = bn(ks[4], planes)
    s3, b3 = bn(ks[5], planes * exp)
    return (w1, s1, b1, w2, s2, b2, w3, s3, b3)


def bottleneck_ref(x_nchw, params, *, bf16_matmul=True):
    """Pure-JAX reference (NHWC convs). With bf16_matmul=True it mirrors the kernel's
    bf16-operand / f32-accumulate matmuls (same folding and rounding points)."""
    w1, s1, b1, w2, s2, b2, w3, s3, b3 = params
    cast = (lambda a: a.astype(jnp.bfloat16)) if bf16_matmul else (lambda a: a)
    w1f, w2f, w3f = cast(w1 * s1), cast(w2 * s2[0]), cast(w3 * s3)

    x = jnp.transpose(x_nchw, (0, 2, 3, 1)).astype(jnp.float32)
    y = jnp.einsum('nhwc,cp->nhwp', cast(x), w1f,
                   preferred_element_type=jnp.float32)
    y = jnp.maximum(y + b1[0], 0.0)
    y = lax.conv_general_dilated(cast(y), w2f, (1, 1), ((1, 1), (1, 1)),
                                 dimension_numbers=('NHWC', 'HWIO', 'NHWC'),
                                 preferred_element_type=jnp.float32)
    y = jnp.maximum(y + b2[0], 0.0)
    y = jnp.einsum('nhwp,pc->nhwc', cast(y), w3f,
                   preferred_element_type=jnp.float32)
    y = y + b3[0]
    y = jnp.maximum(y + x, 0.0)
    return jnp.transpose(y, (0, 3, 1, 2))


if __name__ == "__main__":
    key = jax.random.PRNGKey(0)
    k_x, k_p = jax.random.split(key)

    # batch=2, inplanes=128 (= planes*4, planes=32), 32x16 spatial:
    # lane-dense 128-channel output stores and 2 row tiles per image (TH=16),
    # so both the image-edge and interior halo paths are exercised.
    N, inplanes, planes, H, Wd = 2, 128, 32, 32, 16
    x = jax.random.normal(k_x, (N, inplanes, H, Wd), jnp.float32)
    params = make_params(k_p, inplanes, planes)

    out = jax.block_until_ready(bottleneck_pallas(x, params))
    assert out.shape == (N, inplanes, H, Wd)

    ref_bf16 = bottleneck_ref(x, params, bf16_matmul=True)    # same rounding as kernel
    ref_f32 = bottleneck_ref(x, params, bf16_matmul=False)    # exact f32 math
    assert jnp.allclose(out, ref_bf16, atol=1e-2, rtol=1e-2), "mismatch vs bf16 reference"
    assert jnp.allclose(out, ref_f32, atol=1.5e-1, rtol=1.5e-1), "mismatch vs f32 reference"

    print("KERNEL_OK")
</pallas_src>

<mosaic_0001>
module attributes {stable_mosaic.version = 11 : i64} {
  func.func @_bottleneck_kernel(%arg0: i32, %arg1: i32, %arg2: memref<1x32x16x128xf32, #tpu.memory_space<vmem>>, %arg3: memref<128x32xbf16, #tpu.memory_space<vmem>>, %arg4: memref<1x32xf32, #tpu.memory_space<vmem>>, %arg5: memref<3x96x32xbf16, #tpu.memory_space<vmem>>, %arg6: memref<1x32xf32, #tpu.memory_space<vmem>>, %arg7: memref<32x128xbf16, #tpu.memory_space<vmem>>, %arg8: memref<1x128xf32, #tpu.memory_space<vmem>>, %arg9: memref<1x16x16x128xf32, #tpu.memory_space<vmem>>) attributes {dimension_semantics = [#tpu.dimension_semantics<parallel>, #tpu.dimension_semantics<arbitrary>], iteration_bounds = array<i64: 2, 2>, scalar_prefetch = 0 : i64, scratch_operands = 0 : i64, tpu.core_type = #tpu.core_type<tc>, window_params = [{transform_indices = @transform_0, window_bounds = array<i64: 1, 32, 16, 128>}, {pipeline_mode = #tpu.pipeline_mode<synchronous>, transform_indices = @transform_1, window_bounds = array<i64: 128, 32>}, {pipeline_mode = #tpu.pipeline_mode<synchronous>, transform_indices = @transform_2, window_bounds = array<i64: 1, 32>}, {pipeline_mode = #tpu.pipeline_mode<synchronous>, transform_indices = @transform_3, window_bounds = array<i64: 3, 96, 32>}, {pipeline_mode = #tpu.pipeline_mode<synchronous>, transform_indices = @transform_4, window_bounds = array<i64: 1, 32>}, {pipeline_mode = #tpu.pipeline_mode<synchronous>, transform_indices = @transform_5, window_bounds = array<i64: 32, 128>}, {pipeline_mode = #tpu.pipeline_mode<synchronous>, transform_indices = @transform_6, window_bounds = array<i64: 1, 128>}, {transform_indices = @transform_7, window_bounds = array<i64: 1, 16, 16, 128>}]} {
    %c16_i32 = arith.constant 16 : i32
    %0 = arith.muli %arg1, %c16_i32 : i32
    %1 = tpu.assume_multiple %0, 16 : i32
    %c1_i32 = arith.constant 1 : i32
    %2 = arith.subi %1, %c1_i32 : i32
    %c0_i32 = arith.constant 0 : i32
    %3 = arith.maxsi %2, %c0_i32 : i32
    %c16_i32_0 = arith.constant 16 : i32
    %4 = arith.addi %1, %c16_i32_0 : i32
    %c31_i32 = arith.constant 31 : i32
    %5 = arith.minsi %4, %c31_i32 : i32
    %c0 = arith.constant 0 : index
    %6 = arith.index_cast %3 : i32 to index
    %c0_1 = arith.constant 0 : index
    %c0_2 = arith.constant 0 : index
    %7 = vector.load %arg2[%c0, %6, %c0_1, %c0_2] : memref<1x32x16x128xf32, #tpu.memory_space<vmem>>, vector<1x1x16x128xf32>
    %8 = vector.shape_cast %7 : vector<1x1x16x128xf32> to vector<1x16x128xf32>
    %9 = arith.truncf %8 : vector<1x16x128xf32> to vector<1x16x128xbf16>
    %c0_3 = arith.constant 0 : index
    %10 = arith.index_cast %1 : i32 to index
    %c0_4 = arith.constant 0 : index
    %c0_5 = arith.constant 0 : index
    %11 = vector.load %arg2[%c0_3, %10, %c0_4, %c0_5] : memref<1x32x16x128xf32, #tpu.memory_space<vmem>>, vector<1x16x16x128xf32>
    %12 = vector.shape_cast %11 : vector<1x16x16x128xf32> to vector<16x16x128xf32>
    %13 = arith.truncf %12 : vector<16x16x128xf32> to vector<16x16x128xbf16>
    %c0_6 = arith.constant 0 : index
    %14 = arith.index_cast %5 : i32 to index
    %c0_7 = arith.constant 0 : index
    %c0_8 = arith.constant 0 : index
    %15 = vector.load %arg2[%c0_6, %14, %c0_7, %c0_8] : memref<1x32x16x128xf32, #tpu.memory_space<vmem>>, vector<1x1x16x128xf32>
    %16 = vector.shape_cast %15 : vector<1x1x16x128xf32> to vector<1x16x128xf32>
    %17 = arith.truncf %16 : vector<1x16x128xf32> to vector<1x16x128xbf16>
    %18 = tpu.concatenate %9, %13, %17 in 0 : vector<1x16x128xbf16>, vector<16x16x128xbf16>, vector<1x16x128xbf16> -> vector<18x16x128xbf16>
    %19 = vector.shape_cast %18 : vector<18x16x128xbf16> to vector<288x128xbf16>
    %c0_9 = arith.constant 0 : index
    %c0_10 = arith.constant 0 : index
    %20 = vector.load %arg3[%c0_9, %c0_10] : memref<128x32xbf16, #tpu.memory_space<vmem>>, vector<128x32xbf16>
    %cst = arith.constant dense<0.000000e+00> : vector<288x32xf32>
    %21 = tpu.matmul %19, %20, %cst {dimension_numbers = #tpu.dot_dimension_numbers<[1], [0], [0], [1], [0, 0, 1, 1], [], []>} : vector<288x128xbf16>, vector<128x32xbf16>, vector<288x32xf32> -> vector<288x32xf32>
    %c0_11 = arith.constant 0 : index
    %c0_12 = arith.constant 0 : index
    %22 = vector.load %arg4[%c0_11, %c0_12] : memref<1x32xf32, #tpu.memory_space<vmem>>, vector<1x32xf32>
    %23 = vector.broadcast %22 : vector<1x32xf32> to vector<288x32xf32>
    %24 = arith.addf %21, %23 : vector<288x32xf32>
    %cst_13 = arith.constant 0.000000e+00 : f32
    %25 = vector.broadcast %cst_13 : f32 to vector<288x32xf32>
    %26 = arith.maximumf %24, %25 : vector<288x32xf32>
    %27 = vector.shape_cast %26 : vector<288x32xf32> to vector<18x16x32xf32>
    %c1_i32_14 = arith.constant 1 : i32
    %28 = arith.subi %1, %c1_i32_14 : i32
    %29 = tpu.iota {dimensions = array<i32: 0>} : vector<18x1x1xi32>
    %30 = vector.broadcast %28 : i32 to vector<18x1x1xi32>
    %31 = arith.addi %30, %29 : vector<18x1x1xi32>
    %c0_i32_15 = arith.constant 0 : i32
    %32 = vector.broadcast %c0_i32_15 : i32 to vector<18x1x1xi32>
    %33 = arith.cmpi sge, %31, %32 : vector<18x1x1xi32>
    %c32_i32 = arith.constant 32 : i32
    %34 = vector.broadcast %c32_i32 : i32 to vector<18x1x1xi32>
    %35 = arith.cmpi slt, %31, %34 : vector<18x1x1xi32>
    %36 = arith.andi %33, %35 : vector<18x1x1xi1>
    %cst_16 = arith.constant 0.000000e+00 : f32
    %37 = vector.shape_cast %36 : vector<18x1x1xi1> to vector<18x1x1xi1>
    %38 = vector.broadcast %37 : vector<18x1x1xi1> to vector<18x16x32xi1>
    %39 = vector.broadcast %cst_16 : f32 to vector<18x16x32xf32>
    %40 = arith.select %38, %27, %39 : vector<18x16x32xi1>, vector<18x16x32xf32>
    %41 = vector.shape_cast %40 : vector<18x16x32xf32> to vector<288x32xf32>
    %42 = tpu.iota {dimensions = array<i32: 1>} : vector<1x16x1xi32>
    %c0_i32_17 = arith.constant 0 : i32
    %43 = vector.broadcast %c0_i32_17 : i32 to vector<1x16x1xi32>
    %44 = arith.cmpi eq, %42, %43 : vector<1x16x1xi32>
    %c1_i32_18 = arith.constant 1 : i32
    %45 = tpu.dynamic_rotate %41 by %c1_i32_18 dim 0 : vector<288x32xf32>, i32 -> vector<288x32xf32>
    %46 = vector.shape_cast %45 : vector<288x32xf32> to vector<18x16x32xf32>
    %cst_19 = arith.constant 0.000000e+00 : f32
    %47 = vector.shape_cast %44 : vector<1x16x1xi1> to vector<1x16x1xi1>
    %48 = vector.broadcast %47 : vector<1x16x1xi1> to vector<18x16x32xi1>
    %49 = vector.broadcast %cst_19 : f32 to vector<18x16x32xf32>
    %50 = arith.select %48, %49, %46 : vector<18x16x32xi1>, vector<18x16x32xf32>
    %c15_i32 = arith.constant 15 : i32
    %51 = vector.broadcast %c15_i32 : i32 to vector<1x16x1xi32>
    %52 = arith.cmpi eq, %42, %51 : vector<1x16x1xi32>
    %c287_i32 = arith.constant 287 : i32
    %53 = tpu.dynamic_rotate %41 by %c287_i32 dim 0 : vector<288x32xf32>, i32 -> vector<288x32xf32>
    %54 = vector.shape_cast %53 : vector<288x32xf32> to vector<18x16x32xf32>
    %cst_20 = arith.constant 0.000000e+00 : f32
    %55 = vector.shape_cast %52 : vector<1x16x1xi1> to vector<1x16x1xi1>
    %56 = vector.broadcast %55 : vector<1x16x1xi1> to vector<18x16x32xi1>
    %57 = vector.broadcast %cst_20 : f32 to vector<18x16x32xf32>
    %58 = arith.select %56, %57, %54 : vector<18x16x32xi1>, vector<18x16x32xf32>
    %59 = tpu.concatenate %50, %40, %58 in 2 : vector<18x16x32xf32>, vector<18x16x32xf32>, vector<18x16x32xf32> -> vector<18x16x96xf32>
    %60 = arith.truncf %59 : vector<18x16x96xf32> to vector<18x16x96xbf16>
    %cst_21 = arith.constant 0.000000e+00 : f32
    %61 = vector.broadcast %cst_21 : f32 to vector<256x32xf32>
    %62 = vector.extract_strided_slice %60 {offsets = [0, 0, 0], sizes = [16, 16, 96], strides = [1, 1, 1]} : vector<18x16x96xbf16> to vector<16x16x96xbf16>
    %63 = vector.shape_cast %62 : vector<16x16x96xbf16> to vector<256x96xbf16>
    %c0_22 = arith.constant 0 : index
    %c0_23 = arith.constant 0 : index
    %c0_24 = arith.constant 0 : index
    %64 = vector.load %arg5[%c0_22, %c0_23, %c0_24] : memref<3x96x32xbf16, #tpu.memory_space<vmem>>, vector<1x96x32xbf16>
    %65 = vector.shape_cast %64 : vector<1x96x32xbf16> to vector<96x32xbf16>
    %cst_25 = arith.constant dense<0.000000e+00> : vector<256x32xf32>
    %66 = tpu.matmul %63, %65, %cst_25 {dimension_numbers = #tpu.dot_dimension_numbers<[1], [0], [0], [1], [0, 0, 1, 1], [], []>} : vector<256x96xbf16>, vector<96x32xbf16>, vector<256x32xf32> -> vector<256x32xf32>
    %67 = arith.addf %61, %66 : vector<256x32xf32>
    %68 = vector.extract_strided_slice %60 {offsets = [1, 0, 0], sizes = [16, 16, 96], strides = [1, 1, 1]} : vector<18x16x96xbf16> to vector<16x16x96xbf16>
    %69 = vector.shape_cast %68 : vector<16x16x96xbf16> to vector<256x96xbf16>
    %c1 = arith.constant 1 : index
    %c0_26 = arith.constant 0 : index
    %c0_27 = arith.constant 0 : index
    %70 = vector.load %arg5[%c1, %c0_26, %c0_27] : memref<3x96x32xbf16, #tpu.memory_space<vmem>>, vector<1x96x32xbf16>
    %71 = vector.shape_cast %70 : vector<1x96x32xbf16> to vector<96x32xbf16>
    %cst_28 = arith.constant dense<0.000000e+00> : vector<256x32xf32>
    %72 = tpu.matmul %69, %71, %cst_28 {dimension_numbers = #tpu.dot_dimension_numbers<[1], [0], [0], [1], [0, 0, 1, 1], [], []>} : vector<256x96xbf16>, vector<96x32xbf16>, vector<256x32xf32> -> vector<256x32xf32>
    %73 = arith.addf %67, %72 : vector<256x32xf32>
    %74 = vector.extract_strided_slice %60 {offsets = [2, 0, 0], sizes = [16, 16, 96], strides = [1, 1, 1]} : vector<18x16x96xbf16> to vector<16x16x96xbf16>
    %75 = vector.shape_cast %74 : vector<16x16x96xbf16> to vector<256x96xbf16>
    %c2 = arith.constant 2 : index
    %c0_29 = arith.constant 0 : index
    %c0_30 = arith.constant 0 : index
    %76 = vector.load %arg5[%c2, %c0_29, %c0_30] : memref<3x96x32xbf16, #tpu.memory_space<vmem>>, vector<1x96x32xbf16>
    %77 = vector.shape_cast %76 : vector<1x96x32xbf16> to vector<96x32xbf16>
    %cst_31 = arith.constant dense<0.000000e+00> : vector<256x32xf32>
    %78 = tpu.matmul %75, %77, %cst_31 {dimension_numbers = #tpu.dot_dimension_numbers<[1], [0], [0], [1], [0, 0, 1, 1], [], []>} : vector<256x96xbf16>, vector<96x32xbf16>, vector<256x32xf32> -> vector<256x32xf32>
    %79 = arith.addf %73, %78 : vector<256x32xf32>
    %c0_32 = arith.constant 0 : index
    %c0_33 = arith.constant 0 : index
    %80 = vector.load %arg6[%c0_32, %c0_33] : memref<1x32xf32, #tpu.memory_space<vmem>>, vector<1x32xf32>
    %81 = vector.broadcast %80 : vector<1x32xf32> to vector<256x32xf32>
    %82 = arith.addf %79, %81 : vector<256x32xf32>
    %cst_34 = arith.constant 0.000000e+00 : f32
    %83 = vector.broadcast %cst_34 : f32 to vector<256x32xf32>
    %84 = arith.maximumf %82, %83 : vector<256x32xf32>
    %85 = arith.truncf %84 : vector<256x32xf32> to vector<256x32xbf16>
    %c0_35 = arith.constant 0 : index
    %c0_36 = arith.constant 0 : index
    %86 = vector.load %arg7[%c0_35, %c0_36] : memref<32x128xbf16, #tpu.memory_space<vmem>>, vector<32x128xbf16>
    %cst_37 = arith.constant dense<0.000000e+00> : vector<256x128xf32>
    %87 = tpu.matmul %85, %86, %cst_37 {dimension_numbers = #tpu.dot_dimension_numbers<[1], [0], [0], [1], [0, 0, 1, 1], [], []>} : vector<256x32xbf16>, vector<32x128xbf16>, vector<256x128xf32> -> vector<256x128xf32>
    %c0_38 = arith.constant 0 : index
    %c0_39 = arith.constant 0 : index
    %88 = vector.load %arg8[%c0_38, %c0_39] : memref<1x128xf32, #tpu.memory_space<vmem>>, vector<1x128xf32>
    %89 = vector.broadcast %88 : vector<1x128xf32> to vector<256x128xf32>
    %90 = arith.addf %87, %89 : vector<256x128xf32>
    %c0_40 = arith.constant 0 : index
    %91 = arith.index_cast %1 : i32 to index
    %c0_41 = arith.constant 0 : index
    %c0_42 = arith.constant 0 : index
    %92 = vector.load %arg2[%c0_40, %91, %c0_41, %c0_42] : memref<1x32x16x128xf32, #tpu.memory_space<vmem>>, vector<1x16x16x128xf32>
    %93 = vector.shape_cast %92 : vector<1x16x16x128xf32> to vector<256x128xf32>
    %94 = arith.addf %90, %93 : vector<256x128xf32>
    %cst_43 = arith.constant 0.000000e+00 : f32
    %95 = vector.broadcast %cst_43 : f32 to vector<256x128xf32>
    %96 = arith.maximumf %94, %95 : vector<256x128xf32>
    %97 = vector.shape_cast %96 : vector<256x128xf32> to vector<1x16x16x128xf32>
    %c0_44 = arith.constant 0 : index
    %c0_45 = arith.constant 0 : index
    %c0_46 = arith.constant 0 : index
    %c0_47 = arith.constant 0 : index
    %98 = vector.load %arg9[%c0_44, %c0_45, %c0_46, %c0_47] : memref<1x16x16x128xf32, #tpu.memory_space<vmem>>, vector<1x16x16x128xf32>
    tpu.vector_store %arg9[%c0_44, %c0_45, %c0_46, %c0_47], %97 {strides = array<i32>} : memref<1x16x16x128xf32, #tpu.memory_space<vmem>>, vector<1x16x16x128xf32>,
    return
  }
  func.func @transform_0(%arg0: i32, %arg1: i32) -> (i32, i32, i32, i32) {
    %c0_i32 = arith.constant 0 : i32
    %c0_i32_0 = arith.constant 0 : i32
    %c0_i32_1 = arith.constant 0 : i32
    %c0_i32_2 = arith.constant 0 : i32
    return %arg0, %c0_i32, %c0_i32_0, %c0_i32_1 : i32, i32, i32, i32
  }
  func.func @transform_1(%arg0: i32, %arg1: i32) -> (i32, i32) {
    %c0_i32 = arith.constant 0 : i32
    %c0_i32_0 = arith.constant 0 : i32
    %c0_i32_1 = arith.constant 0 : i32
    return %c0_i32, %c0_i32_0 : i32, i32
  }
  func.func @transform_2(%arg0: i32, %arg1: i32) -> (i32, i32) {
    %c0_i32 = arith.constant 0 : i32
    %c0_i32_0 = arith.constant 0 : i32
    %c0_i32_1 = arith.constant 0 : i32
    return %c0_i32, %c0_i32_0 : i32, i32
  }
  func.func @transform_3(%arg0: i32, %arg1: i32) -> (i32, i32, i32) {
    %c0_i32 = arith.constant 0 : i32
    %c0_i32_0 = arith.constant 0 : i32
    %c0_i32_1 = arith.constant 0 : i32
    %c0_i32_2 = arith.constant 0 : i32
    return %c0_i32, %c0_i32_0, %c0_i32_1 : i32, i32, i32
  }
  func.func @transform_4(%arg0: i32, %arg1: i32) -> (i32, i32) {
    %c0_i32 = arith.constant 0 : i32
    %c0_i32_0 = arith.constant 0 : i32
    %c0_i32_1 = arith.constant 0 : i32
    return %c0_i32, %c0_i32_0 : i32, i32
  }
  func.func @transform_5(%arg0: i32, %arg1: i32) -> (i32, i32) {
    %c0_i32 = arith.constant 0 : i32
    %c0_i32_0 = arith.constant 0 : i32
    %c0_i32_1 = arith.constant 0 : i32
    return %c0_i32, %c0_i32_0 : i32, i32
  }
  func.func @transform_6(%arg0: i32, %arg1: i32) -> (i32, i32) {
    %c0_i32 = arith.constant 0 : i32
    %c0_i32_0 = arith.constant 0 : i32
    %c0_i32_1 = arith.constant 0 : i32
    return %c0_i32, %c0_i32_0 : i32, i32
  }
  func.func @transform_7(%arg0: i32, %arg1: i32) -> (i32, i32, i32, i32) {
    %c0_i32 = arith.constant 0 : i32
    %c0_i32_0 = arith.constant 0 : i32
    %c0_i32_1 = arith.constant 0 : i32
    return %arg0, %arg1, %c0_i32, %c0_i32_0 : i32, i32, i32, i32
  }
}

</mosaic_0001>

<llo_original>
// kernel: tpu_custom_call.1
$region0: #{tpu_custom_call.1}
  #allocation0 [shape = 'u32[]', space=smem, size = 0x4, offset = 0x4, fixed_abs, tag = 'smem constant byte address 0x4 - core index']
  #allocation1 [shape = 'u32[72,128]{1,0:T(1,128)}', space=vmem, size = 0x9000, scoped, tag = 'internal scratch']
  %s0 = inlined_call_operand.hbm [shape: f32[2,32,16,128], index: 0, kind: input, shape index: {}]
  %s1 = inlined_call_operand.vmem [shape: bf16[128,32], index: 1, kind: input, shape index: {}]
  %s2 = inlined_call_operand.vmem [shape: f32[1,32], index: 2, kind: input, shape index: {}]
  %s3 = inlined_call_operand.vmem [shape: bf16[3,96,32], index: 3, kind: input, shape index: {}]
  %s4 = inlined_call_operand.vmem [shape: f32[1,32], index: 4, kind: input, shape index: {}]
  %s5 = inlined_call_operand.vmem [shape: bf16[32,128], index: 5, kind: input, shape index: {}]
  %s6 = inlined_call_operand.vmem [shape: f32[1,128], index: 6, kind: input, shape index: {}]
  %s7 = inlined_call_operand.hbm [shape: f32[2,32,16,128], index: 7, kind: output, shape index: {}]
  %s8 = sld [smem:[#allocation0]]
  $region65: #{tpu_custom_call.1} parent=0
    _
  %s10 = ssub.s32 1, %s8
  %s11 = scalar_select 0, %s10, %s8
  $region1: #{tpu_custom_call.1} parent=0
    #allocation2 [shape = 'u8[524288]{0}', space=vmem, size = 0x80000, scoped, tag = 'input window, operand 0']
    #allocation3 [shape = 's32[2]{0}', space=sflag, size = 0x8, scoped, tag = 'scoped memory for tpu_custom_call.1']
    #allocation4 [shape = 's32[2]{0}', space=sflag, size = 0x8, scoped, tag = 'scoped memory for tpu_custom_call.1']
    #allocation5 [shape = 'u8[262144]{0}', space=vmem, size = 0x40000, scoped, tag = 'output window, operand 0']
    %12 = vsyncpa [#allocation3], 0
    %s13 = scalar_lea.sflag [#allocation3], 1
    %14 = vsyncpa %s13, 0
    %15 = vsyncpa [#allocation4], 0
    %s16 = scalar_lea.sflag [#allocation4], 1
    %17 = vsyncpa %s16, 0
    loop: start=0, step=1, limit=6
    $region2: #{tpu_custom_call.1} parent=1 // loop_pre_header
      _
    $region3: #{tpu_custom_call.1} parent=1 // loop_header
      %s19 = sphi 0, %s23
      %p20 = scmp.ge.s32.totalorder %s19, 6
      %s26 = sphi 0, %s38
      %s27 = sphi 0, %s34
      %s28 = sphi 0, %s26
      %s29 = sphi 0, %s27
      %s30 = sphi 0, %s28
      %s31 = sphi 0, %s29
      %s41 = sphi 0, %s43
      %s44 = sphi 0, %s41
      %s45 = sphi 0, %s44
      %s61 = sphi 0, %s45
      %s65 = sphi 0, %s65
      %s67 = sphi 0, %s65
      %s68 = sphi 0, %s67
      %s82 = sphi 0, %s68
      %s86 = sphi 0, %s86
      %s88 = sphi 0, %s86
      %s89 = sphi 0, %s88
      %s103 = sphi 0, %s89
      %s107 = sphi 0, %s107
      %s109 = sphi 0, %s107
      %s110 = sphi 0, %s109
      %s124 = sphi 0, %s110
      %s128 = sphi 0, %s128
      %s130 = sphi 0, %s128
      %s131 = sphi 0, %s130
      %s145 = sphi 0, %s131
      %s149 = sphi 0, %s149
      %s151 = sphi 0, %s149
      %s152 = sphi 0, %s151
      %s166 = sphi 0, %s152
      %s170 = sphi 0, %s170
      %s172 = sphi 0, %s170
      %s173 = sphi 0, %s172
      %s187 = sphi 0, %s173
      %s195 = sphi 0, %s197
      %s198 = sphi 0, %s195
      %s199 = sphi 0, %s198
      %s215 = sphi 0, %s199
    $region4: #{tpu_custom_call.1} parent=1 // loop_header_branch
      %22 = sbr.rel (%p20) target = $region8
    $region5: #{tpu_custom_call.1} parent=1 // loop_body
      %s24 = ssub.s32 %s19, 1
      %s25 = ssub.s32 %s19, 2
      %s32 = sadd.s32 1, %s27
      %p33 = scmp.ge.s32.totalorder %s32, 2
      %s34 = scalar_select %p33, 0, %s32
      %s35 = sadd.s32 1, %s26
      %s36 = scalar_select %p33, %s35, %s26
      %p37 = scmp.ge.s32.totalorder %s36, 2
      %s38 = scalar_select %p37, 0, %s36
      %s39 = ssub.s32 %s26, %s38
      %p40 = scmp.eq.s32.totalorder %s39, 0
      %s42 = sadd.s32 %s41, 1
      %s43 = scalar_select %p40, %s41, %s42
      %p46 = pneg %p40
      %p47 = scmp.eq.s32.totalorder %s19, 3
      %p48 = por %p46, %p47
      %p49 = scmp.ne.s32.totalorder %s41, %s44
      %p50 = scmp.eq.s32.totalorder %s19, 0
      %p51 = por %p49, %p50
      %p52 = scmp.ne.s32.totalorder %s41, %s44
      %p53 = scmp.eq.s32.totalorder %s24, 3
      %p54 = por %p52, %p53
      %p55 = scmp.ne.s32.totalorder %s44, %s45
      %p56 = scmp.eq.s32.totalorder %s24, 0
      %p57 = por %p55, %p56
      %p58 = scmp.ne.s32.totalorder %s44, %s45
      %p59 = scmp.eq.s32.totalorder %s25, 3
      %p60 = por %p58, %p59
      %p62 = scmp.ne.s32.totalorder %s45, %s61
      %p63 = scmp.eq.s32.totalorder %s25, 0
      %p64 = por %p62, %p63
      %s66 = sadd.s32 %s65, 1
      %p69 = scmp.eq.s32.totalorder %s19, 3
      %p70 = scmp.ne.s32.totalorder %s65, %s67
      %p71 = scmp.eq.s32.totalorder %s19, 0
      %p72 = por %p70, %p71
      %p73 = scmp.ne.s32.totalorder %s65, %s67
      %p74 = scmp.eq.s32.totalorder %s24, 3
      %p75 = por %p73, %p74
      %p76 = scmp.ne.s32.totalorder %s67, %s68
      %p77 = scmp.eq.s32.totalorder %s24, 0
      %p78 = por %p76, %p77
      %p79 = scmp.ne.s32.totalorder %s67, %s68
      %p80 = scmp.eq.s32.totalorder %s25, 3
      %p81 = por %p79, %p80
      %p83 = scmp.ne.s32.totalorder %s68, %s82
      %p84 = scmp.eq.s32.totalorder %s25, 0
      %p85 = por %p83, %p84
      %s87 = sadd.s32 %s86, 1
      %p90 = scmp.eq.s32.totalorder %s19, 3
      %p91 = scmp.ne.s32.totalorder %s86, %s88
      %p92 = scmp.eq.s32.totalorder %s19, 0
      %p93 = por %p91, %p92
      %p94 = scmp.ne.s32.totalorder %s86, %s88
      %p95 = scmp.eq.s32.totalorder %s24, 3
      %p96 = por %p94, %p95
      %p97 = scmp.ne.s32.totalorder %s88, %s89
      %p98 = scmp.eq.s32.totalorder %s24, 0
      %p99 = por %p97, %p98
      %p100 = scmp.ne.s32.totalorder %s88, %s89
      %p101 = scmp.eq.s32.totalorder %s25, 3
      %p102 = por %p100, %p101
      %p104 = scmp.ne.s32.totalorder %s89, %s103
      %p105 = scmp.eq.s32.totalorder %s25, 0
      %p106 = por %p104, %p105
      %s108 = sadd.s32 %s107, 1
      %p111 = scmp.eq.s32.totalorder %s19, 3
      %p112 = scmp.ne.s32.totalorder %s107, %s109
      %p113 = scmp.eq.s32.totalorder %s19, 0
      %p114 = por %p112, %p113
      %p115 = scmp.ne.s32.totalorder %s107, %s109
      %p116 = scmp.eq.s32.totalorder %s24, 3
      %p117 = por %p115, %p116
      %p118 = scmp.ne.s32.totalorder %s109, %s110
      %p119 = scmp.eq.s32.totalorder %s24, 0
      %p120 = por %p118, %p119
      %p121 = scmp.ne.s32.totalorder %s109, %s110
      %p122 = scmp.eq.s32.totalorder %s25, 3
      %p123 = por %p121, %p122
      %p125 = scmp.ne.s32.totalorder %s110, %s124
      %p126 = scmp.eq.s32.totalorder %s25, 0
      %p127 = por %p125, %p126
      %s129 = sadd.s32 %s128, 1
      %p132 = scmp.eq.s32.totalorder %s19, 3
      %p133 = scmp.ne.s32.totalorder %s128, %s130
      %p134 = scmp.eq.s32.totalorder %s19, 0
      %p135 = por %p133, %p134
      %p136 = scmp.ne.s32.totalorder %s128, %s130
      %p137 = scmp.eq.s32.totalorder %s24, 3
      %p138 = por %p136, %p137
      %p139 = scmp.ne.s32.totalorder %s130, %s131
      %p140 = scmp.eq.s32.totalorder %s24, 0
      %p141 = por %p139, %p140
      %p142 = scmp.ne.s32.totalorder %s130, %s131
      %p143 = scmp.eq.s32.totalorder %s25, 3
      %p144 = por %p142, %p143
      %p146 = scmp.ne.s32.totalorder %s131, %s145
      %p147 = scmp.eq.s32.totalorder %s25, 0
      %p148 = por %p146, %p147
      %s150 = sadd.s32 %s149, 1
      %p153 = scmp.eq.s32.totalorder %s19, 3
      %p154 = scmp.ne.s32.totalorder %s149, %s151
      %p155 = scmp.eq.s32.totalorder %s19, 0
      %p156 = por %p154, %p155
      %p157 = scmp.ne.s32.totalorder %s149, %s151
      %p158 = scmp.eq.s32.totalorder %s24, 3
      %p159 = por %p157, %p158
      %p160 = scmp.ne.s32.totalorder %s151, %s152
      %p161 = scmp.eq.s32.totalorder %s24, 0
      %p162 = por %p160, %p161
      %p163 = scmp.ne.s32.totalorder %s151, %s152
      %p164 = scmp.eq.s32.totalorder %s25, 3
      %p165 = por %p163, %p164
      %p167 = scmp.ne.s32.totalorder %s152, %s166
      %p168 = scmp.eq.s32.totalorder %s25, 0
      %p169 = por %p167, %p168
      %s171 = sadd.s32 %s170, 1
      %p174 = scmp.eq.s32.totalorder %s19, 3
      %p175 = scmp.ne.s32.totalorder %s170, %s172
      %p176 = scmp.eq.s32.totalorder %s19, 0
      %p177 = por %p175, %p176
      %p178 = scmp.ne.s32.totalorder %s170, %s172
      %p179 = scmp.eq.s32.totalorder %s24, 3
      %p180 = por %p178, %p179
      %p181 = scmp.ne.s32.totalorder %s172, %s173
      %p182 = scmp.eq.s32.totalorder %s24, 0
      %p183 = por %p181, %p182
      %p184 = scmp.ne.s32.totalorder %s172, %s173
      %p185 = scmp.eq.s32.totalorder %s25, 3
      %p186 = por %p184, %p185
      %p188 = scmp.ne.s32.totalorder %s173, %s187
      %p189 = scmp.eq.s32.totalorder %s25, 0
      %p190 = por %p188, %p189
      %s191 = ssub.s32 %s26, %s38
      %s192 = ssub.s32 %s27, %s34
      %s193 = sor.u32 %s191, %s192
      %p194 = scmp.eq.s32.totalorder %s193, 0
      %s196 = sadd.s32 %s195, 1
      %s197 = scalar_select %p194, %s195, %s196
      %p200 = pneg %p194
      %p201 = scmp.eq.s32.totalorder %s19, 3
      %p202 = por %p200, %p201
      %p203 = scmp.ne.s32.totalorder %s195, %s198
      %p204 = scmp.eq.s32.totalorder %s19, 0
      %p205 = por %p203, %p204
      %p206 = scmp.ne.s32.totalorder %s195, %s198
      %p207 = scmp.eq.s32.totalorder %s24, 3
      %p208 = por %p206, %p207
      %p209 = scmp.ne.s32.totalorder %s198, %s199
      %p210 = scmp.eq.s32.totalorder %s24, 0
      %p211 = por %p209, %p210
      %p212 = scmp.ne.s32.totalorder %s198, %s199
      %p213 = scmp.eq.s32.totalorder %s25, 3
      %p214 = por %p212, %p213
      %p216 = scmp.ne.s32.totalorder %s199, %s215
      %p217 = scmp.eq.s32.totalorder %s25, 0
      %p218 = por %p216, %p217
      %p219 = scmp.le.s32.totalorder 1, %s19
      %p220 = scmp.lt.s32.totalorder %s19, 5
      %p221 = pnand %p219, %p220
      %p222 = pneg %p221
      // Predicated region
      $region9: #{tpu_custom_call.1} parent=5 // pred_check
        _
      $region10: #{tpu_custom_call.1} parent=5 // pred_check_branch
        %224 = sbr.rel (%p221) target = $region12
      $region11: #{tpu_custom_call.1} parent=5 // pred_region
        %s225 = ssub.s32 %s19, 1
        // Predicated region
        $region13: #{tpu_custom_call.1} parent=11 // pred_check
          %p226 = pneg %p78
        $region14: #{tpu_custom_call.1} parent=11 // pred_check_branch
          %228 = sbr.rel (%p226) target = $region16
        $region15: #{tpu_custom_call.1} parent=11 // pred_region
          _
        $region16: #{tpu_custom_call.1} parent=11 // pred_fallthru
          _
        // Predicated region
        $region17: #{tpu_custom_call.1} parent=11 // pred_check
          %p229 = pneg %p99
        $region18: #{tpu_custom_call.1} parent=11 // pred_check_branch
          %231 = sbr.rel (%p229) target = $region20
        $region19: #{tpu_custom_call.1} parent=11 // pred_region
          _
        $region20: #{tpu_custom_call.1} parent=11 // pred_fallthru
          _
        // Predicated region
        $region21: #{tpu_custom_call.1} parent=11 // pred_check
          %p232 = pneg %p120
        $region22: #{tpu_custom_call.1} parent=11 // pred_check_branch
          %234 = sbr.rel (%p232) target = $region24
        $region23: #{tpu_custom_call.1} parent=11 // pred_region
          _
        $region24: #{tpu_custom_call.1} parent=11 // pred_fallthru
          _
        // Predicated region
        $region25: #{tpu_custom_call.1} parent=11 // pred_check
          %p235 = pneg %p141
        $region26: #{tpu_custom_call.1} parent=11 // pred_check_branch
          %237 = sbr.rel (%p235) target = $region28
        $region27: #{tpu_custom_call.1} parent=11 // pred_region
          _
        $region28: #{tpu_custom_call.1} parent=11 // pred_fallthru
          _
        // Predicated region
        $region29: #{tpu_custom_call.1} parent=11 // pred_check
          %p238 = pneg %p162
        $region30: #{tpu_custom_call.1} parent=11 // pred_check_branch
          %240 = sbr.rel (%p238) target = $region32
        $region31: #{tpu_custom_call.1} parent=11 // pred_region
          _
        $region32: #{tpu_custom_call.1} parent=11 // pred_fallthru
          _
        // Predicated region
        $region33: #{tpu_custom_call.1} parent=11 // pred_check
          %p241 = pneg %p183
        $region34: #{tpu_custom_call.1} parent=11 // pred_check_branch
          %243 = sbr.rel (%p241) target = $region36
        $region35: #{tpu_custom_call.1} parent=11 // pred_region
          _
        $region36: #{tpu_custom_call.1} parent=11 // pred_fallthru
          _
      $region12: #{tpu_custom_call.1} parent=5 // pred_fallthru
        _
      %p244 = scmp.lt.s32.totalorder %s19, 4
      // Predicated region
      $region37: #{tpu_custom_call.1} parent=5 // pred_check
        %p245 = pneg %p244
      $region38: #{tpu_custom_call.1} parent=5 // pred_check_branch
        %247 = sbr.rel (%p245) target = $region40
      $region39: #{tpu_custom_call.1} parent=5 // pred_region
        // Predicated region
        $region41: #{tpu_custom_call.1} parent=39 // pred_check
          %p248 = pneg %p51
        $region42: #{tpu_custom_call.1} parent=39 // pred_check_branch
          %250 = sbr.rel (%p248) target = $region44
        $region43: #{tpu_custom_call.1} parent=39 // pred_region
          %s251 = sand.u32 %s41, 1
          %s252 = scalar_lea.sflag [#allocation3], %s251
          %s253 = sand.u32 %s41, 1
          %s254 = smul.addr %s253, 512
          %s255 = scalar_lea.vmem [#allocation2], %s254
          %257 = vsyncadd %s252, 0
          %s258 = smul.addr %s26, 64
          %s259 = smul.addr %s258, 8
          %s260 = scalar_lea.hbm %s0, %s259
          %s261 = sshll.u32 %s260, 4
          %s262 = int_to_ptr.hbm [resolvable:$true] %s261
          %s263 = sshll.u32 %s255, 4
          %s264 = int_to_ptr.vmem [resolvable:$true] %s263
          %269 = dma.hbm_to_vmem [thread:$0]  %s262, 8192, %s264, %s252, 128, 128, 8
        $region44: #{tpu_custom_call.1} parent=39 // pred_fallthru
          _
      $region40: #{tpu_custom_call.1} parent=5 // pred_fallthru
        _
      %p270 = scmp.le.s32.totalorder 1, %s19
      %p271 = scmp.lt.s32.totalorder %s19, 5
      %p272 = pnand %p270, %p271
      %p273 = pneg %p272
      // Predicated region
      $region45: #{tpu_custom_call.1} parent=5 // pred_check
        _
      $region46: #{tpu_custom_call.1} parent=5 // pred_check_branch
        %275 = sbr.rel (%p272) target = $region48
      $region47: #{tpu_custom_call.1} parent=5 // pred_region
        %s276 = ssub.s32 %s19, 1
        %s277 = sand.u32 %s44, 1
        %s278 = scalar_lea.sflag [#allocation3], %s277
        %s279 = sand.u32 %s44, 1
        %s280 = smul.addr %s279, 512
        %s281 = scalar_lea.vmem [#allocation2], %s280
        // Predicated region
        $region49: #{tpu_custom_call.1} parent=47 // pred_check
          %p282 = pneg %p57
        $region50: #{tpu_custom_call.1} parent=47 // pred_check_branch
          %284 = sbr.rel (%p282) target = $region52
        $region51: #{tpu_custom_call.1} parent=47 // pred_region
          %286 = dma.done %s278, 8192
        $region52: #{tpu_custom_call.1} parent=47 // pred_fallthru
          _
        %s287 = sand.u32 %s44, 1
        %s288 = scalar_lea.sflag [#allocation3], %s287
        %s289 = sand.u32 %s44, 1
        %s290 = smul.addr %s289, 512
        %s291 = scalar_lea.vmem [#allocation2], %s290
        %p292 = pneg %p57
        %p293 = pneg %p54
        %p294 = pneg %p78
        %p295 = pneg %p75
        %p296 = pneg %p99
        %p297 = pneg %p96
        %p298 = pneg %p120
        %p299 = pneg %p117
        %p300 = pneg %p141
        %p301 = pneg %p138
        %p302 = pneg %p162
        %p303 = pneg %p159
        %p304 = pneg %p183
        %p305 = pneg %p180
        %p306 = pneg %p211
        %p307 = pneg %p208
        %s308 = sand.u32 %s198, 1
        %s309 = scalar_lea.sflag [#allocation4], %s308
        %s310 = sand.u32 %s198, 1
        %s311 = smul.addr %s310, 256
        %s312 = scalar_lea.vmem [#allocation5], %s311
        %s313 = smul.u32 16, %s29
        %s315 = smul.u32 %s29, 16
        %s316 = ssub.s32 %s315, 1
        %p317 = scmp.gt.s32.totalorder %s316, 0
        %s318 = scalar_select %p317, %s316, 0
        %s319 = sadd.s32 %s315, 16
        %p320 = scmp.lt.s32.totalorder %s319, 31
        %s321 = scalar_select %p320, %s319, 31
        %s322 = smul.u32 %s318, 16
        %s323 = scalar_lea.vmem %s281, %s322 [#allocation2]
        %v324 = vld [vmem:[%s323] sm:$0xff]
        %v325 = vld [vmem:[%s323 + $0x8] sm:$0xff]
        %v326 = vpack.c.bf16 %v324, %v324
        %v327 = vpack.c.bf16 %v325, %v325
        %s328 = smul.u32 %s315, 16
        %s329 = scalar_lea.vmem %s281, %s328 [#allocation2]
        %v330 = vld [vmem:[%s329] sm:$0xff]
        %v331 = vld [vmem:[%s329 + $0x8] sm:$0xff]
        %v332 = vld [vmem:[%s329 + $0x10] sm:$0xff]
        %v333 = vld [vmem:[%s329 + $0x18] sm:$0xff]
        %v334 = vld [vmem:[%s329 + $0x20] sm:$0xff]
        %v335 = vld [vmem:[%s329 + $0x28] sm:$0xff]
        %v336 = vld [vmem:[%s329 + $0x30] sm:$0xff]
        %v337 = vld [vmem:[%s329 + $0x38] sm:$0xff]
        %v338 = vld [vmem:[%s329 + $0x40] sm:$0xff]
        %v339 = vld [vmem:[%s329 + $0x48] sm:$0xff]
        %v340 = vld [vmem:[%s329 + $0x50] sm:$0xff]
        %v341 = vld [vmem:[%s329 + $0x58] sm:$0xff]
        %v342 = vld [vmem:[%s329 + $0x60] sm:$0xff]
        %v343 = vld [vmem:[%s329 + $0x68] sm:$0xff]
        %v344 = vld [vmem:[%s329 + $0x70] sm:$0xff]
        %v345 = vld [vmem:[%s329 + $0x78] sm:$0xff]
        %v346 = vld [vmem:[%s329 + $0x80] sm:$0xff]
        %v347 = vld [vmem:[%s329 + $0x88] sm:$0xff]
        %v348 = vld [vmem:[%s329 + $0x90] sm:$0xff]
        %v349 = vld [vmem:[%s329 + $0x98] sm:$0xff]
        %v350 = vld [vmem:[%s329 + $0xa0] sm:$0xff]
        %v351 = vld [vmem:[%s329 + $0xa8] sm:$0xff]
        %v352 = vld [vmem:[%s329 + $0xb0] sm:$0xff]
        %v353 = vld [vmem:[%s329 + $0xb8] sm:$0xff]
        %v354 = vld [vmem:[%s329 + $0xc0] sm:$0xff]
        %v355 = vld [vmem:[%s329 + $0xc8] sm:$0xff]
        %v356 = vld [vmem:[%s329 + $0xd0] sm:$0xff]
        %v357 = vld [vmem:[%s329 + $0xd8] sm:$0xff]
        %v358 = vld [vmem:[%s329 + $0xe0] sm:$0xff]
        %v359 = vld [vmem:[%s329 + $0xe8] sm:$0xff]
        %v360 = vld [vmem:[%s329 + $0xf0] sm:$0xff]
        %v361 = vld [vmem:[%s329 + $0xf8] sm:$0xff]
        %v362 = vpack.c.bf16 %v330, %v330
        %v363 = vpack.c.bf16 %v331, %v331
        %v364 = vpack.c.bf16 %v332, %v332
        %v365 = vpack.c.bf16 %v333, %v333
        %v366 = vpack.c.bf16 %v334, %v334
        %v367 = vpack.c.bf16 %v335, %v335
        %v368 = vpack.c.bf16 %v336, %v336
        %v369 = vpack.c.bf16 %v337, %v337
        %v370 = vpack.c.bf16 %v338, %v338
        %v371 = vpack.c.bf16 %v339, %v339
        %v372 = vpack.c.bf16 %v340, %v340
        %v373 = vpack.c.bf16 %v341, %v341
        %v374 = vpack.c.bf16 %v342, %v342
        %v375 = vpack.c.bf16 %v343, %v343
        %v376 = vpack.c.bf16 %v344, %v344
        %v377 = vpack.c.bf16 %v345, %v345
        %v378 = vpack.c.bf16 %v346, %v346
        %v379 = vpack.c.bf16 %v347, %v347
        %v380 = vpack.c.bf16 %v348, %v348
        %v381 = vpack.c.bf16 %v349, %v349
        %v382 = vpack.c.bf16 %v350, %v350
        %v383 = vpack.c.bf16 %v351, %v351
        %v384 = vpack.c.bf16 %v352, %v352
        %v385 = vpack.c.bf16 %v353, %v353
        %v386 = vpack.c.bf16 %v354, %v354
        %v387 = vpack.c.bf16 %v355, %v355
        %v388 = vpack.c.bf16 %v356, %v356
        %v389 = vpack.c.bf16 %v357, %v357
        %v390 = vpack.c.bf16 %v358, %v358
        %v391 = vpack.c.bf16 %v359, %v359
        %v392 = vpack.c.bf16 %v360, %v360
        %v393 = vpack.c.bf16 %v361, %v361
        %s394 = smul.u32 %s321, 16
        %s395 = scalar_lea.vmem %s281, %s394 [#allocation2]
        %v396 = vld [vmem:[%s395] sm:$0xff]
        %v397 = vld [vmem:[%s395 + $0x8] sm:$0xff]
        %v398 = vpack.c.bf16 %v396, %v396
        %v399 = vpack.c.bf16 %v397, %v397
        %v400 = vld [vmem:[%s1] sm:$0xf]
        %v401 = vld [vmem:[%s1 + $0x4] sm:$0xf]
        %v402 = vld [vmem:[%s1 + $0x8] sm:$0xf]
        %v403 = vld [vmem:[%s1 + $0xc] sm:$0xf]
        %v404 = vld [vmem:[%s1 + $0x10] sm:$0xf]
        %v405 = vld [vmem:[%s1 + $0x14] sm:$0xf]
        %v406 = vld [vmem:[%s1 + $0x18] sm:$0xf]
        %v407 = vld [vmem:[%s1 + $0x1c] sm:$0xf]
        %v408 = vld [vmem:[%s1 + $0x20] sm:$0xf]
        %v409 = vld [vmem:[%s1 + $0x24] sm:$0xf]
        %v410 = vld [vmem:[%s1 + $0x28] sm:$0xf]
        %v411 = vld [vmem:[%s1 + $0x2c] sm:$0xf]
        %v412 = vld [vmem:[%s1 + $0x30] sm:$0xf]
        %v413 = vld [vmem:[%s1 + $0x34] sm:$0xf]
        %v414 = vld [vmem:[%s1 + $0x38] sm:$0xf]
        %v415 = vld [vmem:[%s1 + $0x3c] sm:$0xf]
        %v416 = vld [vmem:[%s2] sm:$0x1]
        %v418 = vperm.slane %v416, 0
        %v456 = vunpack.c.l.b16 %v326
        %v457 = vunpack.c.l.b16 %v327
        %v458 = vunpack.c.l.b16 %v362
        %v459 = vunpack.c.l.b16 %v363
        %v460 = vunpack.c.l.b16 %v364
        %v461 = vunpack.c.l.b16 %v365
        %v462 = vunpack.c.l.b16 %v366
        %v463 = vunpack.c.l.b16 %v367
        %v464 = vunpack.c.l.b16 %v368
        %v465 = vunpack.c.l.b16 %v369
        %v466 = vunpack.c.l.b16 %v370
        %v467 = vunpack.c.l.b16 %v371
        %v468 = vunpack.c.l.b16 %v372
        %v469 = vunpack.c.l.b16 %v373
        %v470 = vunpack.c.l.b16 %v374
        %v471 = vunpack.c.l.b16 %v375
        %v472 = vunpack.c.l.b16 %v376
        %v473 = vunpack.c.l.b16 %v377
        %v474 = vunpack.c.l.b16 %v378
        %v475 = vunpack.c.l.b16 %v379
        %v476 = vunpack.c.l.b16 %v380
        %v477 = vunpack.c.l.b16 %v381
        %v478 = vunpack.c.l.b16 %v382
        %v479 = vunpack.c.l.b16 %v383
        %v480 = vunpack.c.l.b16 %v384
        %v481 = vunpack.c.l.b16 %v385
        %v482 = vunpack.c.l.b16 %v386
        %v483 = vunpack.c.l.b16 %v387
        %v484 = vunpack.c.l.b16 %v388
        %v485 = vunpack.c.l.b16 %v389
        %v486 = vunpack.c.l.b16 %v390
        %v487 = vunpack.c.l.b16 %v391
        %v488 = vunpack.c.l.b16 %v392
        %v489 = vunpack.c.l.b16 %v393
        %v490 = vunpack.c.l.b16 %v398
        %v491 = vunpack.c.l.b16 %v399
        %v492 = vpack.c.b16 %v457, %v456
        %v493 = vpack.c.b16 %v459, %v458
        %v494 = vpack.c.b16 %v461, %v460
        %v495 = vpack.c.b16 %v463, %v462
        %v496 = vpack.c.b16 %v465, %v464
        %v497 = vpack.c.b16 %v467, %v466
        %v498 = vpack.c.b16 %v469, %v468
        %v499 = vpack.c.b16 %v471, %v470
        %v500 = vpack.c.b16 %v473, %v472
        %v501 = vpack.c.b16 %v475, %v474
        %v502 = vpack.c.b16 %v477, %v476
        %v503 = vpack.c.b16 %v479, %v478
        %v504 = vpack.c.b16 %v481, %v480
        %v505 = vpack.c.b16 %v483, %v482
        %v506 = vpack.c.b16 %v485, %v484
        %v507 = vpack.c.b16 %v487, %v486
        %v508 = vpack.c.b16 %v489, %v488
        %v509 = vpack.c.b16 %v491, %v490
        %v544 = vunpack.c.l.b16 %v400
        %v545 = vunpack.c.l.b16 %v401
        %v546 = vunpack.c.l.b16 %v402
        %v547 = vunpack.c.l.b16 %v403
        %v548 = vunpack.c.l.b16 %v404
        %v549 = vunpack.c.l.b16 %v405
        %v550 = vunpack.c.l.b16 %v406
        %v551 = vunpack.c.l.b16 %v407
        %v552 = vunpack.c.l.b16 %v408
        %v553 = vunpack.c.l.b16 %v409
        %v554 = vunpack.c.l.b16 %v410
        %v555 = vunpack.c.l.b16 %v411
        %v556 = vunpack.c.l.b16 %v412
        %v557 = vunpack.c.l.b16 %v413
        %v558 = vunpack.c.l.b16 %v414
        %v559 = vunpack.c.l.b16 %v415
        %v560 = vpack.c.b16 %v545, %v544
        %v561 = vpack.c.b16 %v547, %v546
        %v562 = vpack.c.b16 %v549, %v548
        %v563 = vpack.c.b16 %v551, %v550
        %v564 = vpack.c.b16 %v553, %v552
        %v565 = vpack.c.b16 %v555, %v554
        %v566 = vpack.c.b16 %v557, %v556
        %v567 = vpack.c.b16 %v559, %v558
        %576 = vmatpush.bf16.msra.mxu0 %v567
        %577 = vmatpush.bf16.msra.mxu0 %v566
        %578 = vmatpush.bf16.msra.mxu0 %v565
        %579 = vmatpush.bf16.msra.mxu0 %v564
        %580 = vmatpush.bf16.msra.mxu0 %v563
        %581 = vmatpush.bf16.msra.mxu0 %v562
        %582 = vmatpush.bf16.msra.mxu0 %v561
        %583 = vmatpush.bf16.msra.mxu0 %v560
        %584 = vmatmul.bf16.gmra.mxu0 %v492
        %v585 = vpop.f32.mrf.mxu0
        %v586 = vadd.f32 %v418, %v585
        %v587 = vpop.f32.mrf.mxu0
        %v588 = vadd.f32 %v418, %v587
        %589 = vmatmul.bf16.gmra.mxu0 %v493
        %v590 = vpop.f32.mrf.mxu0
        %v591 = vadd.f32 %v418, %v590
        %v592 = vpop.f32.mrf.mxu0
        %v593 = vadd.f32 %v418, %v592
        %594 = vmatmul.bf16.gmra.mxu0 %v494
        %v595 = vpop.f32.mrf.mxu0
        %v596 = vadd.f32 %v418, %v595
        %v597 = vpop.f32.mrf.mxu0
        %v598 = vadd.f32 %v418, %v597
        %599 = vmatmul.bf16.gmra.mxu0 %v495
        %v600 = vpop.f32.mrf.mxu0
        %v601 = vadd.f32 %v418, %v600
        %v602 = vpop.f32.mrf.mxu0
        %v603 = vadd.f32 %v418, %v602
        %604 = vmatmul.bf16.gmra.mxu0 %v496
        %v605 = vpop.f32.mrf.mxu0
        %v606 = vadd.f32 %v418, %v605
        %v607 = vpop.f32.mrf.mxu0
        %v608 = vadd.f32 %v418, %v607
        %609 = vmatmul.bf16.gmra.mxu0 %v497
        %v610 = vpop.f32.mrf.mxu0
        %v611 = vadd.f32 %v418, %v610
        %v612 = vpop.f32.mrf.mxu0
        %v613 = vadd.f32 %v418, %v612
        %614 = vmatmul.bf16.gmra.mxu0 %v498
        %v615 = vpop.f32.mrf.mxu0
        %v616 = vadd.f32 %v418, %v615
        %v617 = vpop.f32.mrf.mxu0
        %v618 = vadd.f32 %v418, %v617
        %619 = vmatmul.bf16.gmra.mxu0 %v499
        %v620 = vpop.f32.mrf.mxu0
        %v621 = vadd.f32 %v418, %v620
        %v622 = vpop.f32.mrf.mxu0
        %v623 = vadd.f32 %v418, %v622
        %624 = vmatmul.bf16.gmra.mxu0 %v500
        %v625 = vpop.f32.mrf.mxu0
        %v626 = vadd.f32 %v418, %v625
        %v627 = vpop.f32.mrf.mxu0
        %v628 = vadd.f32 %v418, %v627
        %629 = vmatmul.bf16.gmra.mxu0 %v501
        %v630 = vpop.f32.mrf.mxu0
        %v631 = vadd.f32 %v418, %v630
        %v632 = vpop.f32.mrf.mxu0
        %v633 = vadd.f32 %v418, %v632
        %634 = vmatmul.bf16.gmra.mxu0 %v502
        %v635 = vpop.f32.mrf.mxu0
        %v636 = vadd.f32 %v418, %v635
        %v637 = vpop.f32.mrf.mxu0
        %v638 = vadd.f32 %v418, %v637
        %639 = vmatmul.bf16.gmra.mxu0 %v503
        %v640 = vpop.f32.mrf.mxu0
        %v641 = vadd.f32 %v418, %v640
        %v642 = vpop.f32.mrf.mxu0
        %v643 = vadd.f32 %v418, %v642
        %644 = vmatmul.bf16.gmra.mxu0 %v504
        %v645 = vpop.f32.mrf.mxu0
        %v646 = vadd.f32 %v418, %v645
        %v647 = vpop.f32.mrf.mxu0
        %v648 = vadd.f32 %v418, %v647
        %649 = vmatmul.bf16.gmra.mxu0 %v505
        %v650 = vpop.f32.mrf.mxu0
        %v651 = vadd.f32 %v418, %v650
        %v652 = vpop.f32.mrf.mxu0
        %v653 = vadd.f32 %v418, %v652
        %654 = vmatmul.bf16.gmra.mxu0 %v506
        %v655 = vpop.f32.mrf.mxu0
        %v656 = vadd.f32 %v418, %v655
        %v657 = vpop.f32.mrf.mxu0
        %v658 = vadd.f32 %v418, %v657
        %659 = vmatmul.bf16.gmra.mxu0 %v507
        %v660 = vpop.f32.mrf.mxu0
        %v661 = vadd.f32 %v418, %v660
        %v662 = vpop.f32.mrf.mxu0
        %v663 = vadd.f32 %v418, %v662
        %664 = vmatmul.bf16.gmra.mxu0 %v508
        %v665 = vpop.f32.mrf.mxu0
        %v666 = vadd.f32 %v418, %v665
        %v667 = vpop.f32.mrf.mxu0
        %v668 = vadd.f32 %v418, %v667
        %669 = vmatmul.bf16.gmra.mxu0 %v509
        %v670 = vpop.f32.mrf.mxu0
        %v671 = vadd.f32 %v418, %v670
        %v672 = vpop.f32.mrf.mxu0
        %v673 = vadd.f32 %v418, %v672
        %674 = vdwg.mxu0
        %v675 = vmax.f32 %v586, 0.0
        %v676 = vmax.f32 %v588, 0.0
        %v677 = vmax.f32 %v591, 0.0
        %v678 = vmax.f32 %v593, 0.0
        %v679 = vmax.f32 %v596, 0.0
        %v680 = vmax.f32 %v598, 0.0
        %v681 = vmax.f32 %v601, 0.0
        %v682 = vmax.f32 %v603, 0.0
        %v683 = vmax.f32 %v606, 0.0
        %v684 = vmax.f32 %v608, 0.0
        %v685 = vmax.f32 %v611, 0.0
        %v686 = vmax.f32 %v613, 0.0
        %v687 = vmax.f32 %v616, 0.0
        %v688 = vmax.f32 %v618, 0.0
        %v689 = vmax.f32 %v621, 0.0
        %v690 = vmax.f32 %v623, 0.0
        %v691 = vmax.f32 %v626, 0.0
        %v692 = vmax.f32 %v628, 0.0
        %v693 = vmax.f32 %v631, 0.0
        %v694 = vmax.f32 %v633, 0.0
        %v695 = vmax.f32 %v636, 0.0
        %v696 = vmax.f32 %v638, 0.0
        %v697 = vmax.f32 %v641, 0.0
        %v698 = vmax.f32 %v643, 0.0
        %v699 = vmax.f32 %v646, 0.0
        %v700 = vmax.f32 %v648, 0.0
        %v701 = vmax.f32 %v651, 0.0
        %v702 = vmax.f32 %v653, 0.0
        %v703 = vmax.f32 %v656, 0.0
        %v704 = vmax.f32 %v658, 0.0
        %v705 = vmax.f32 %v661, 0.0
        %v706 = vmax.f32 %v663, 0.0
        %v707 = vmax.f32 %v666, 0.0
        %v708 = vmax.f32 %v668, 0.0
        %v709 = vmax.f32 %v671, 0.0
        %v710 = vmax.f32 %v673, 0.0
        %v711 = vstv %s316
        %v712 = vadd.s32 %v711, 1
        %v713 = vadd.s32 %v711, 2
        %v714 = vadd.s32 %v711, 3
        %v715 = vadd.s32 %v711, 4
        %v716 = vadd.s32 %v711, 5
        %v717 = vadd.s32 %v711, 6
        %v718 = vadd.s32 %v711, 7
        %v719 = vadd.s32 %v711, 8
        %v720 = vadd.s32 %v711, 9
        %v721 = vadd.s32 %v711, 10
        %v722 = vadd.s32 %v711, 11
        %v723 = vadd.s32 %v711, 12
        %v724 = vadd.s32 %v711, 13
        %v725 = vadd.s32 %v711, 14
        %v726 = vadd.s32 %v711, 15
        %v727 = vadd.s32 %v711, 16
        %v728 = vadd.s32 %v711, 17
        %vm729 = vcmp.ge.s32.totalorder %v711, 0
        %vm730 = vcmp.ge.s32.totalorder %v712, 0
        %vm731 = vcmp.ge.s32.totalorder %v713, 0
        %vm732 = vcmp.ge.s32.totalorder %v714, 0
        %vm733 = vcmp.ge.s32.totalorder %v715, 0
        %vm734 = vcmp.ge.s32.totalorder %v716, 0
        %vm735 = vcmp.ge.s32.totalorder %v717, 0
        %vm736 = vcmp.ge.s32.totalorder %v718, 0
        %vm737 = vcmp.ge.s32.totalorder %v719, 0
        %vm738 = vcmp.ge.s32.totalorder %v720, 0
        %vm739 = vcmp.ge.s32.totalorder %v721, 0
        %vm740 = vcmp.ge.s32.totalorder %v722, 0
        %vm741 = vcmp.ge.s32.totalorder %v723, 0
        %vm742 = vcmp.ge.s32.totalorder %v724, 0
        %vm743 = vcmp.ge.s32.totalorder %v725, 0
        %vm744 = vcmp.ge.s32.totalorder %v726, 0
        %vm745 = vcmp.ge.s32.totalorder %v727, 0
        %vm746 = vcmp.ge.s32.totalorder %v728, 0
        %vm747 = vcmp.lt.s32.totalorder %v711, 32
        %vm748 = vcmp.lt.s32.totalorder %v712, 32
        %vm749 = vcmp.lt.s32.totalorder %v713, 32
        %vm750 = vcmp.lt.s32.totalorder %v714, 32
        %vm751 = vcmp.lt.s32.totalorder %v715, 32
        %vm752 = vcmp.lt.s32.totalorder %v716, 32
        %vm753 = vcmp.lt.s32.totalorder %v717, 32
        %vm754 = vcmp.lt.s32.totalorder %v718, 32
        %vm755 = vcmp.lt.s32.totalorder %v719, 32
        %vm756 = vcmp.lt.s32.totalorder %v720, 32
        %vm757 = vcmp.lt.s32.totalorder %v721, 32
        %vm758 = vcmp.lt.s32.totalorder %v722, 32
        %vm759 = vcmp.lt.s32.totalorder %v723, 32
        %vm760 = vcmp.lt.s32.totalorder %v724, 32
        %vm761 = vcmp.lt.s32.totalorder %v725, 32
        %vm762 = vcmp.lt.s32.totalorder %v726, 32
        %vm763 = vcmp.lt.s32.totalorder %v727, 32
        %vm764 = vcmp.lt.s32.totalorder %v728, 32
        %vm765 = vmand %vm729, %vm747
        %vm766 = vmand %vm730, %vm748
        %vm767 = vmand %vm731, %vm749
        %vm768 = vmand %vm732, %vm750
        %vm769 = vmand %vm733, %vm751
        %vm770 = vmand %vm734, %vm752
        %vm771 = vmand %vm735, %vm753
        %vm772 = vmand %vm736, %vm754
        %vm773 = vmand %vm737, %vm755
        %vm774 = vmand %vm738, %vm756
        %vm775 = vmand %vm739, %vm757
        %vm776 = vmand %vm740, %vm758
        %vm777 = vmand %vm741, %vm759
        %vm778 = vmand %vm742, %vm760
        %vm779 = vmand %vm743, %vm761
        %vm780 = vmand %vm744, %vm762
        %vm781 = vmand %vm745, %vm763
        %vm782 = vmand %vm746, %vm764
        %v783 = vsel %vm765, 1, 0
        %v784 = vsel %vm766, 1, 0
        %v785 = vsel %vm767, 1, 0
        %v786 = vsel %vm768, 1, 0
        %v787 = vsel %vm769, 1, 0
        %v788 = vsel %vm770, 1, 0
        %v789 = vsel %vm771, 1, 0
        %v790 = vsel %vm772, 1, 0
        %v791 = vsel %vm773, 1, 0
        %v792 = vsel %vm774, 1, 0
        %v793 = vsel %vm775, 1, 0
        %v794 = vsel %vm776, 1, 0
        %v795 = vsel %vm777, 1, 0
        %v796 = vsel %vm778, 1, 0
        %v797 = vsel %vm779, 1, 0
        %v798 = vsel %vm780, 1, 0
        %v799 = vsel %vm781, 1, 0
        %v800 = vsel %vm782, 1, 0
        %vm801 = vcmp.eq.s32.totalorder %v783, 1
        %vm802 = vcmp.eq.s32.totalorder %v784, 1
        %vm803 = vcmp.eq.s32.totalorder %v785, 1
        %vm804 = vcmp.eq.s32.totalorder %v786, 1
        %vm805 = vcmp.eq.s32.totalorder %v787, 1
        %vm806 = vcmp.eq.s32.totalorder %v788, 1
        %vm807 = vcmp.eq.s32.totalorder %v789, 1
        %vm808 = vcmp.eq.s32.totalorder %v790, 1
        %vm809 = vcmp.eq.s32.totalorder %v791, 1
        %vm810 = vcmp.eq.s32.totalorder %v792, 1
        %vm811 = vcmp.eq.s32.totalorder %v793, 1
        %vm812 = vcmp.eq.s32.totalorder %v794, 1
        %vm813 = vcmp.eq.s32.totalorder %v795, 1
        %vm814 = vcmp.eq.s32.totalorder %v796, 1
        %vm815 = vcmp.eq.s32.totalorder %v797, 1
        %vm816 = vcmp.eq.s32.totalorder %v798, 1
        %vm817 = vcmp.eq.s32.totalorder %v799, 1
        %vm818 = vcmp.eq.s32.totalorder %v800, 1
        %v819 = vsel %vm801, %v675, 0.0
        %v820 = vsel %vm801, %v676, 0.0
        %v821 = vsel %vm802, %v677, 0.0
        %v822 = vsel %vm802, %v678, 0.0
        %v823 = vsel %vm803, %v679, 0.0
        %v824 = vsel %vm803, %v680, 0.0
        %v825 = vsel %vm804, %v681, 0.0
        %v826 = vsel %vm804, %v682, 0.0
        %v827 = vsel %vm805, %v683, 0.0
        %v828 = vsel %vm805, %v684, 0.0
        %v829 = vsel %vm806, %v685, 0.0
        %v830 = vsel %vm806, %v686, 0.0
        %v831 = vsel %vm807, %v687, 0.0
        %v832 = vsel %vm807, %v688, 0.0
        %v833 = vsel %vm808, %v689, 0.0
        %v834 = vsel %vm808, %v690, 0.0
        %v835 = vsel %vm809, %v691, 0.0
        %v836 = vsel %vm809, %v692, 0.0
        %v837 = vsel %vm810, %v693, 0.0
        %v838 = vsel %vm810, %v694, 0.0
        %v839 = vsel %vm811, %v695, 0.0
        %v840 = vsel %vm811, %v696, 0.0
        %v841 = vsel %vm812, %v697, 0.0
        %v842 = vsel %vm812, %v698, 0.0
        %v843 = vsel %vm813, %v699, 0.0
        %v844 = vsel %vm813, %v700, 0.0
        %v845 = vsel %vm814, %v701, 0.0
        %v846 = vsel %vm814, %v702, 0.0
        %v847 = vsel %vm815, %v703, 0.0
        %v848 = vsel %vm815, %v704, 0.0
        %v849 = vsel %vm816, %v705, 0.0
        %v850 = vsel %vm816, %v706, 0.0
        %v851 = vsel %vm817, %v707, 0.0
        %v852 = vsel %vm817, %v708, 0.0
        %v853 = vsel %vm818, %v709, 0.0
        %v854 = vsel %vm818, %v710, 0.0
        %v855 = vlaneseq
        %v856 = vshrl.u32 %v855, 7
        %v857 = vadd.s32 %v856, 8
        %vm858 = vcmp.eq.s32.totalorder %v856, 0
        %vm859 = vcmp.eq.s32.totalorder %v857, 0
        %v860 = vrot.slane %v819, 7
        %v861 = vrot.slane %v820, 7
        %v862 = vrot.slane %v821, 7
        %v863 = vrot.slane %v822, 7
        %v864 = vrot.slane %v823, 7
        %v865 = vrot.slane %v824, 7
        %v866 = vrot.slane %v825, 7
        %v867 = vrot.slane %v826, 7
        %v868 = vrot.slane %v827, 7
        %v869 = vrot.slane %v828, 7
        %v870 = vrot.slane %v829, 7
        %v871 = vrot.slane %v830, 7
        %v872 = vrot.slane %v831, 7
        %v873 = vrot.slane %v832, 7
        %v874 = vrot.slane %v833, 7
        %v875 = vrot.slane %v834, 7
        %v876 = vrot.slane %v835, 7
        %v877 = vrot.slane %v836, 7
        %v878 = vrot.slane %v837, 7
        %v879 = vrot.slane %v838, 7
        %v880 = vrot.slane %v839, 7
        %v881 = vrot.slane %v840, 7
        %v882 = vrot.slane %v841, 7
        %v883 = vrot.slane %v842, 7
        %v884 = vrot.slane %v843, 7
        %v885 = vrot.slane %v844, 7
        %v886 = vrot.slane %v845, 7
        %v887 = vrot.slane %v846, 7
        %v888 = vrot.slane %v847, 7
        %v889 = vrot.slane %v848, 7
        %v890 = vrot.slane %v849, 7
        %v891 = vrot.slane %v850, 7
        %v892 = vrot.slane %v851, 7
        %v893 = vrot.slane %v852, 7
        %v894 = vrot.slane %v853, 7
        %v895 = vrot.slane %v854, 7
        %vm896 = vcmp.lt.s32.totalorder %v856, 1
        %v897 = vsel %vm896, %v894, %v895
        %v898 = vsel %vm896, %v893, %v894
        %v899 = vsel %vm896, %v892, %v893
        %v900 = vsel %vm896, %v891, %v892
        %v901 = vsel %vm896, %v890, %v891
        %v902 = vsel %vm896, %v889, %v890
        %v903 = vsel %vm896, %v888, %v889
        %v904 = vsel %vm896, %v887, %v888
        %v905 = vsel %vm896, %v886, %v887
        %v906 = vsel %vm896, %v885, %v886
        %v907 = vsel %vm896, %v884, %v885
        %v908 = vsel %vm896, %v883, %v884
        %v909 = vsel %vm896, %v882, %v883
        %v910 = vsel %vm896, %v881, %v882
        %v911 = vsel %vm896, %v880, %v881
        %v912 = vsel %vm896, %v879, %v880
        %v913 = vsel %vm896, %v878, %v879
        %v914 = vsel %vm896, %v877, %v878
        %v915 = vsel %vm896, %v876, %v877
        %v916 = vsel %vm896, %v875, %v876
        %v917 = vsel %vm896, %v874, %v875
        %v918 = vsel %vm896, %v873, %v874
        %v919 = vsel %vm896, %v872, %v873
        %v920 = vsel %vm896, %v871, %v872
        %v921 = vsel %vm896, %v870, %v871
        %v922 = vsel %vm896, %v869, %v870
        %v923 = vsel %vm896, %v868, %v869
        %v924 = vsel %vm896, %v867, %v868
        %v925 = vsel %vm896, %v866, %v867
        %v926 = vsel %vm896, %v865, %v866
        %v927 = vsel %vm896, %v864, %v865
        %v928 = vsel %vm896, %v863, %v864
        %v929 = vsel %vm896, %v862, %v863
        %v930 = vsel %vm896, %v861, %v862
        %v931 = vsel %vm896, %v860, %v861
        %v932 = vsel %vm896, %v895, %v860
        %v933 = vsel %vm858, 1, 0
        %v934 = vsel %vm859, 1, 0
        %vm935 = vcmp.eq.s32.totalorder %v933, 1
        %vm936 = vcmp.eq.s32.totalorder %v934, 1
        %v937 = vsel %vm935, 0.0, %v932
        %v938 = vsel %vm936, 0.0, %v931
        %v939 = vsel %vm935, 0.0, %v930
        %v940 = vsel %vm936, 0.0, %v929
        %v941 = vsel %vm935, 0.0, %v928
        %v942 = vsel %vm936, 0.0, %v927
        %v943 = vsel %vm935, 0.0, %v926
        %v944 = vsel %vm936, 0.0, %v925
        %v945 = vsel %vm935, 0.0, %v924
        %v946 = vsel %vm936, 0.0, %v923
        %v947 = vsel %vm935, 0.0, %v922
        %v948 = vsel %vm936, 0.0, %v921
        %v949 = vsel %vm935, 0.0, %v920
        %v950 = vsel %vm936, 0.0, %v919
        %v951 = vsel %vm935, 0.0, %v918
        %v952 = vsel %vm936, 0.0, %v917
        %v953 = vsel %vm935, 0.0, %v916
        %v954 = vsel %vm936, 0.0, %v915
        %v955 = vsel %vm935, 0.0, %v914
        %v956 = vsel %vm936, 0.0, %v913
        %v957 = vsel %vm935, 0.0, %v912
        %v958 = vsel %vm936, 0.0, %v911
        %v959 = vsel %vm935, 0.0, %v910
        %v960 = vsel %vm936, 0.0, %v909
        %v961 = vsel %vm935, 0.0, %v908
        %v962 = vsel %vm936, 0.0, %v907
        %v963 = vsel %vm935, 0.0, %v906
        %v964 = vsel %vm936, 0.0, %v905
        %v965 = vsel %vm935, 0.0, %v904
        %v966 = vsel %vm936, 0.0, %v903
        %v967 = vsel %vm935, 0.0, %v902
        %v968 = vsel %vm936, 0.0, %v901
        %v969 = vsel %vm935, 0.0, %v900
        %v970 = vsel %vm936, 0.0, %v899
        %v971 = vsel %vm935, 0.0, %v898
        %v972 = vsel %vm936, 0.0, %v897
        %vm973 = vcmp.eq.s32.totalorder %v856, 15
        %vm974 = vcmp.eq.s32.totalorder %v857, 15
        %v975 = vrot.slane %v819, 1
        %v976 = vrot.slane %v820, 1
        %v977 = vrot.slane %v821, 1
        %v978 = vrot.slane %v822, 1
        %v979 = vrot.slane %v823, 1
        %v980 = vrot.slane %v824, 1
        %v981 = vrot.slane %v825, 1
        %v982 = vrot.slane %v826, 1
        %v983 = vrot.slane %v827, 1
        %v984 = vrot.slane %v828, 1
        %v985 = vrot.slane %v829, 1
        %v986 = vrot.slane %v830, 1
        %v987 = vrot.slane %v831, 1
        %v988 = vrot.slane %v832, 1
        %v989 = vrot.slane %v833, 1
        %v990 = vrot.slane %v834, 1
        %v991 = vrot.slane %v835, 1
        %v992 = vrot.slane %v836, 1
        %v993 = vrot.slane %v837, 1
        %v994 = vrot.slane %v838, 1
        %v995 = vrot.slane %v839, 1
        %v996 = vrot.slane %v840, 1
        %v997 = vrot.slane %v841, 1
        %v998 = vrot.slane %v842, 1
        %v999 = vrot.slane %v843, 1
        %v1000 = vrot.slane %v844, 1
        %v1001 = vrot.slane %v845, 1
        %v1002 = vrot.slane %v846, 1
        %v1003 = vrot.slane %v847, 1
        %v1004 = vrot.slane %v848, 1
        %v1005 = vrot.slane %v849, 1
        %v1006 = vrot.slane %v850, 1
        %v1007 = vrot.slane %v851, 1
        %v1008 = vrot.slane %v852, 1
        %v1009 = vrot.slane %v853, 1
        %v1010 = vrot.slane %v854, 1
        %vm1011 = vcmp.lt.s32.totalorder %v856, 7
        %v1012 = vsel %vm1011, %v1009, %v1010
        %v1013 = vsel %vm1011, %v1008, %v1009
        %v1014 = vsel %vm1011, %v1007, %v1008
        %v1015 = vsel %vm1011, %v1006, %v1007
        %v1016 = vsel %vm1011, %v1005, %v1006
        %v1017 = vsel %vm1011, %v1004, %v1005
        %v1018 = vsel %vm1011, %v1003, %v1004
        %v1019 = vsel %vm1011, %v1002, %v1003
        %v1020 = vsel %vm1011, %v1001, %v1002
        %v1021 = vsel %vm1011, %v1000, %v1001
        %v1022 = vsel %vm1011, %v999, %v1000
        %v1023 = vsel %vm1011, %v998, %v999
        %v1024 = vsel %vm1011, %v997, %v998
        %v1025 = vsel %vm1011, %v996, %v997
        %v1026 = vsel %vm1011, %v995, %v996
        %v1027 = vsel %vm1011, %v994, %v995
        %v1028 = vsel %vm1011, %v993, %v994
        %v1029 = vsel %vm1011, %v992, %v993
        %v1030 = vsel %vm1011, %v991, %v992
        %v1031 = vsel %vm1011, %v990, %v991
        %v1032 = vsel %vm1011, %v989, %v990
        %v1033 = vsel %vm1011, %v988, %v989
        %v1034 = vsel %vm1011, %v987, %v988
        %v1035 = vsel %vm1011, %v986, %v987
        %v1036 = vsel %vm1011, %v985, %v986
        %v1037 = vsel %vm1011, %v984, %v985
        %v1038 = vsel %vm1011, %v983, %v984
        %v1039 = vsel %vm1011, %v982, %v983
        %v1040 = vsel %vm1011, %v981, %v982
        %v1041 = vsel %vm1011, %v980, %v981
        %v1042 = vsel %vm1011, %v979, %v980
        %v1043 = vsel %vm1011, %v978, %v979
        %v1044 = vsel %vm1011, %v977, %v978
        %v1045 = vsel %vm1011, %v976, %v977
        %v1046 = vsel %vm1011, %v975, %v976
        %v1047 = vsel %vm1011, %v1010, %v975
        %v1048 = vsel %vm973, 1, 0
        %v1049 = vsel %vm974, 1, 0
        %vm1050 = vcmp.eq.s32.totalorder %v1048, 1
        %vm1051 = vcmp.eq.s32.totalorder %v1049, 1
        %v1052 = vsel %vm1050, 0.0, %v1046
        %v1053 = vsel %vm1051, 0.0, %v1045
        %v1054 = vsel %vm1050, 0.0, %v1044
        %v1055 = vsel %vm1051, 0.0, %v1043
        %v1056 = vsel %vm1050, 0.0, %v1042
        %v1057 = vsel %vm1051, 0.0, %v1041
        %v1058 = vsel %vm1050, 0.0, %v1040
        %v1059 = vsel %vm1051, 0.0, %v1039
        %v1060 = vsel %vm1050, 0.0, %v1038
        %v1061 = vsel %vm1051, 0.0, %v1037
        %v1062 = vsel %vm1050, 0.0, %v1036
        %v1063 = vsel %vm1051, 0.0, %v1035
        %v1064 = vsel %vm1050, 0.0, %v1034
        %v1065 = vsel %vm1051, 0.0, %v1033
        %v1066 = vsel %vm1050, 0.0, %v1032
        %v1067 = vsel %vm1051, 0.0, %v1031
        %v1068 = vsel %vm1050, 0.0, %v1030
        %v1069 = vsel %vm1051, 0.0, %v1029
        %v1070 = vsel %vm1050, 0.0, %v1028
        %v1071 = vsel %vm1051, 0.0, %v1027
        %v1072 = vsel %vm1050, 0.0, %v1026
        %v1073 = vsel %vm1051, 0.0, %v1025
        %v1074 = vsel %vm1050, 0.0, %v1024
        %v1075 = vsel %vm1051, 0.0, %v1023
        %v1076 = vsel %vm1050, 0.0, %v1022
        %v1077 = vsel %vm1051, 0.0, %v1021
        %v1078 = vsel %vm1050, 0.0, %v1020
        %v1079 = vsel %vm1051, 0.0, %v1019
        %v1080 = vsel %vm1050, 0.0, %v1018
        %v1081 = vsel %vm1051, 0.0, %v1017
        %v1082 = vsel %vm1050, 0.0, %v1016
        %v1083 = vsel %vm1051, 0.0, %v1015
        %v1084 = vsel %vm1050, 0.0, %v1014
        %v1085 = vsel %vm1051, 0.0, %v1013
        %v1086 = vsel %vm1050, 0.0, %v1012
        %v1087 = vsel %vm1051, 0.0, %v1047
        %1124 = vrot.lane.b32.xlu0 %v819, 32
        %v1125 = vpop.permute.xlu0 %1124
        %1126 = vrot.lane.b32.xlu0 %v820, 32
        %v1127 = vpop.permute.xlu0 %1126
        %1128 = vrot.lane.b32.xlu0 %v821, 32
        %v1129 = vpop.permute.xlu0 %1128
        %1130 = vrot.lane.b32.xlu0 %v822, 32
        %v1131 = vpop.permute.xlu0 %1130
        %1132 = vrot.lane.b32.xlu0 %v823, 32
        %v1133 = vpop.permute.xlu0 %1132
        %1134 = vrot.lane.b32.xlu0 %v824, 32
        %v1135 = vpop.permute.xlu0 %1134
        %1136 = vrot.lane.b32.xlu0 %v825, 32
        %v1137 = vpop.permute.xlu0 %1136
        %1138 = vrot.lane.b32.xlu0 %v826, 32
        %v1139 = vpop.permute.xlu0 %1138
        %1140 = vrot.lane.b32.xlu0 %v827, 32
        %v1141 = vpop.permute.xlu0 %1140
        %1142 = vrot.lane.b32.xlu0 %v828, 32
        %v1143 = vpop.permute.xlu0 %1142
        %1144 = vrot.lane.b32.xlu0 %v829, 32
        %v1145 = vpop.permute.xlu0 %1144
        %1146 = vrot.lane.b32.xlu0 %v830, 32
        %v1147 = vpop.permute.xlu0 %1146
        %1148 = vrot.lane.b32.xlu0 %v831, 32
        %v1149 = vpop.permute.xlu0 %1148
        %1150 = vrot.lane.b32.xlu0 %v832, 32
        %v1151 = vpop.permute.xlu0 %1150
        %1152 = vrot.lane.b32.xlu0 %v833, 32
        %v1153 = vpop.permute.xlu0 %1152
        %1154 = vrot.lane.b32.xlu0 %v834, 32
        %v1155 = vpop.permute.xlu0 %1154
        %1156 = vrot.lane.b32.xlu0 %v835, 32
        %v1157 = vpop.permute.xlu0 %1156
        %1158 = vrot.lane.b32.xlu0 %v836, 32
        %v1159 = vpop.permute.xlu0 %1158
        %1160 = vrot.lane.b32.xlu0 %v837, 32
        %v1161 = vpop.permute.xlu0 %1160
        %1162 = vrot.lane.b32.xlu0 %v838, 32
        %v1163 = vpop.permute.xlu0 %1162
        %1164 = vrot.lane.b32.xlu0 %v839, 32
        %v1165 = vpop.permute.xlu0 %1164
        %1166 = vrot.lane.b32.xlu0 %v840, 32
        %v1167 = vpop.permute.xlu0 %1166
        %1168 = vrot.lane.b32.xlu0 %v841, 32
        %v1169 = vpop.permute.xlu0 %1168
        %1170 = vrot.lane.b32.xlu0 %v842, 32
        %v1171 = vpop.permute.xlu0 %1170
        %1172 = vrot.lane.b32.xlu0 %v843, 32
        %v1173 = vpop.permute.xlu0 %1172
        %1174 = vrot.lane.b32.xlu0 %v844, 32
        %v1175 = vpop.permute.xlu0 %1174
        %1176 = vrot.lane.b32.xlu0 %v845, 32
        %v1177 = vpop.permute.xlu0 %1176
        %1178 = vrot.lane.b32.xlu0 %v846, 32
        %v1179 = vpop.permute.xlu0 %1178
        %1180 = vrot.lane.b32.xlu0 %v847, 32
        %v1181 = vpop.permute.xlu0 %1180
        %1182 = vrot.lane.b32.xlu0 %v848, 32
        %v1183 = vpop.permute.xlu0 %1182
        %1184 = vrot.lane.b32.xlu0 %v849, 32
        %v1185 = vpop.permute.xlu0 %1184
        %1186 = vrot.lane.b32.xlu0 %v850, 32
        %v1187 = vpop.permute.xlu0 %1186
        %1188 = vrot.lane.b32.xlu0 %v851, 32
        %v1189 = vpop.permute.xlu0 %1188
        %1190 = vrot.lane.b32.xlu0 %v852, 32
        %v1191 = vpop.permute.xlu0 %1190
        %1192 = vrot.lane.b32.xlu0 %v853, 32
        %v1193 = vpop.permute.xlu0 %1192
        %1194 = vrot.lane.b32.xlu0 %v854, 32
        %v1195 = vpop.permute.xlu0 %1194
        %1268 = vrot.lane.b32.xlu0 %v1052, 64
        %v1269 = vpop.permute.xlu0 %1268
        %1270 = vrot.lane.b32.xlu0 %v1053, 64
        %v1271 = vpop.permute.xlu0 %1270
        %1272 = vrot.lane.b32.xlu0 %v1054, 64
        %v1273 = vpop.permute.xlu0 %1272
        %1274 = vrot.lane.b32.xlu0 %v1055, 64
        %v1275 = vpop.permute.xlu0 %1274
        %1276 = vrot.lane.b32.xlu0 %v1056, 64
        %v1277 = vpop.permute.xlu0 %1276
        %1278 = vrot.lane.b32.xlu0 %v1057, 64
        %v1279 = vpop.permute.xlu0 %1278
        %1280 = vrot.lane.b32.xlu0 %v1058, 64
        %v1281 = vpop.permute.xlu0 %1280
        %1282 = vrot.lane.b32.xlu0 %v1059, 64
        %v1283 = vpop.permute.xlu0 %1282
        %1284 = vrot.lane.b32.xlu0 %v1060, 64
        %v1285 = vpop.permute.xlu0 %1284
        %1286 = vrot.lane.b32.xlu0 %v1061, 64
        %v1287 = vpop.permute.xlu0 %1286
        %1288 = vrot.lane.b32.xlu0 %v1062, 64
        %v1289 = vpop.permute.xlu0 %1288
        %1290 = vrot.lane.b32.xlu0 %v1063, 64
        %v1291 = vpop.permute.xlu0 %1290
        %1292 = vrot.lane.b32.xlu0 %v1064, 64
        %v1293 = vpop.permute.xlu0 %1292
        %1294 = vrot.lane.b32.xlu0 %v1065, 64
        %v1295 = vpop.permute.xlu0 %1294
        %1296 = vrot.lane.b32.xlu0 %v1066, 64
        %v1297 = vpop.permute.xlu0 %1296
        %1298 = vrot.lane.b32.xlu0 %v1067, 64
        %v1299 = vpop.permute.xlu0 %1298
        %1300 = vrot.lane.b32.xlu0 %v1068, 64
        %v1301 = vpop.permute.xlu0 %1300
        %1302 = vrot.lane.b32.xlu0 %v1069, 64
        %v1303 = vpop.permute.xlu0 %1302
        %1304 = vrot.lane.b32.xlu0 %v1070, 64
        %v1305 = vpop.permute.xlu0 %1304
        %1306 = vrot.lane.b32.xlu0 %v1071, 64
        %v1307 = vpop.permute.xlu0 %1306
        %1308 = vrot.lane.b32.xlu0 %v1072, 64
        %v1309 = vpop.permute.xlu0 %1308
        %1310 = vrot.lane.b32.xlu0 %v1073, 64
        %v1311 = vpop.permute.xlu0 %1310
        %1312 = vrot.lane.b32.xlu0 %v1074, 64
        %v1313 = vpop.permute.xlu0 %1312
        %1314 = vrot.lane.b32.xlu0 %v1075, 64
        %v1315 = vpop.permute.xlu0 %1314
        %1316 = vrot.lane.b32.xlu0 %v1076, 64
        %v1317 = vpop.permute.xlu0 %1316
        %1318 = vrot.lane.b32.xlu0 %v1077, 64
        %v1319 = vpop.permute.xlu0 %1318
        %1320 = vrot.lane.b32.xlu0 %v1078, 64
        %v1321 = vpop.permute.xlu0 %1320
        %1322 = vrot.lane.b32.xlu0 %v1079, 64
        %v1323 = vpop.permute.xlu0 %1322
        %1324 = vrot.lane.b32.xlu0 %v1080, 64
        %v1325 = vpop.permute.xlu0 %1324
        %1326 = vrot.lane.b32.xlu0 %v1081, 64
        %v1327 = vpop.permute.xlu0 %1326
        %1328 = vrot.lane.b32.xlu0 %v1082, 64
        %v1329 = vpop.permute.xlu0 %1328
        %1330 = vrot.lane.b32.xlu0 %v1083, 64
        %v1331 = vpop.permute.xlu0 %1330
        %1332 = vrot.lane.b32.xlu0 %v1084, 64
        %v1333 = vpop.permute.xlu0 %1332
        %1334 = vrot.lane.b32.xlu0 %v1085, 64
        %v1335 = vpop.permute.xlu0 %1334
        %1336 = vrot.lane.b32.xlu0 %v1086, 64
        %v1337 = vpop.permute.xlu0 %1336
        %1338 = vrot.lane.b32.xlu0 %v1087, 64
        %v1339 = vpop.permute.xlu0 %1338
        %vm1376 = vcmask 261120
        %v1377 = vsel %vm1376, %v937, %v1125
        %v1378 = vsel %vm1376, %v938, %v1127
        %v1379 = vsel %vm1376, %v939, %v1129
        %v1380 = vsel %vm1376, %v940, %v1131
        %v1381 = vsel %vm1376, %v941, %v1133
        %v1382 = vsel %vm1376, %v942, %v1135
        %v1383 = vsel %vm1376, %v943, %v1137
        %v1384 = vsel %vm1376, %v944, %v1139
        %v1385 = vsel %vm1376, %v945, %v1141
        %v1386 = vsel %vm1376, %v946, %v1143
        %v1387 = vsel %vm1376, %v947, %v1145
        %v1388 = vsel %vm1376, %v948, %v1147
        %v1389 = vsel %vm1376, %v949, %v1149
        %v1390 = vsel %vm1376, %v950, %v1151
        %v1391 = vsel %vm1376, %v951, %v1153
        %v1392 = vsel %vm1376, %v952, %v1155
        %v1393 = vsel %vm1376, %v953, %v1157
        %v1394 = vsel %vm1376, %v954, %v1159
        %v1395 = vsel %vm1376, %v955, %v1161
        %v1396 = vsel %vm1376, %v956, %v1163
        %v1397 = vsel %vm1376, %v957, %v1165
        %v1398 = vsel %vm1376, %v958, %v1167
        %v1399 = vsel %vm1376, %v959, %v1169
        %v1400 = vsel %vm1376, %v960, %v1171
        %v1401 = vsel %vm1376, %v961, %v1173
        %v1402 = vsel %vm1376, %v962, %v1175
        %v1403 = vsel %vm1376, %v963, %v1177
        %v1404 = vsel %vm1376, %v964, %v1179
        %v1405 = vsel %vm1376, %v965, %v1181
        %v1406 = vsel %vm1376, %v966, %v1183
        %v1407 = vsel %vm1376, %v967, %v1185
        %v1408 = vsel %vm1376, %v968, %v1187
        %v1409 = vsel %vm1376, %v969, %v1189
        %v1410 = vsel %vm1376, %v970, %v1191
        %v1411 = vsel %vm1376, %v971, %v1193
        %v1412 = vsel %vm1376, %v972, %v1195
        %vm1413 = vcmask 523264
        %v1414 = vsel %vm1413, %v1377, %v1269
        %v1415 = vsel %vm1413, %v1378, %v1271
        %v1416 = vsel %vm1413, %v1379, %v1273
        %v1417 = vsel %vm1413, %v1380, %v1275
        %v1418 = vsel %vm1413, %v1381, %v1277
        %v1419 = vsel %vm1413, %v1382, %v1279
        %v1420 = vsel %vm1413, %v1383, %v1281
        %v1421 = vsel %vm1413, %v1384, %v1283
        %v1422 = vsel %vm1413, %v1385, %v1285
        %v1423 = vsel %vm1413, %v1386, %v1287
        %v1424 = vsel %vm1413, %v1387, %v1289
        %v1425 = vsel %vm1413, %v1388, %v1291
        %v1426 = vsel %vm1413, %v1389, %v1293
        %v1427 = vsel %vm1413, %v1390, %v1295
        %v1428 = vsel %vm1413, %v1391, %v1297
        %v1429 = vsel %vm1413, %v1392, %v1299
        %v1430 = vsel %vm1413, %v1393, %v1301
        %v1431 = vsel %vm1413, %v1394, %v1303
        %v1432 = vsel %vm1413, %v1395, %v1305
        %v1433 = vsel %vm1413, %v1396, %v1307
        %v1434 = vsel %vm1413, %v1397, %v1309
        %v1435 = vsel %vm1413, %v1398, %v1311
        %v1436 = vsel %vm1413, %v1399, %v1313
        %v1437 = vsel %vm1413, %v1400, %v1315
        %v1438 = vsel %vm1413, %v1401, %v1317
        %v1439 = vsel %vm1413, %v1402, %v1319
        %v1440 = vsel %vm1413, %v1403, %v1321
        %v1441 = vsel %vm1413, %v1404, %v1323
        %v1442 = vsel %vm1413, %v1405, %v1325
        %v1443 = vsel %vm1413, %v1406, %v1327
        %v1444 = vsel %vm1413, %v1407, %v1329
        %v1445 = vsel %vm1413, %v1408, %v1331
        %v1446 = vsel %vm1413, %v1409, %v1333
        %v1447 = vsel %vm1413, %v1410, %v1335
        %v1448 = vsel %vm1413, %v1411, %v1337
        %v1449 = vsel %vm1413, %v1412, %v1339
        %v1450 = vpack.c.bf16 %v1414, %v1414
        %v1451 = vpack.c.bf16 %v1415, %v1415
        %v1452 = vpack.c.bf16 %v1416, %v1416
        %v1453 = vpack.c.bf16 %v1417, %v1417
        %v1454 = vpack.c.bf16 %v1418, %v1418
        %v1455 = vpack.c.bf16 %v1419, %v1419
        %v1456 = vpack.c.bf16 %v1420, %v1420
        %v1457 = vpack.c.bf16 %v1421, %v1421
        %v1458 = vpack.c.bf16 %v1422, %v1422
        %v1459 = vpack.c.bf16 %v1423, %v1423
        %v1460 = vpack.c.bf16 %v1424, %v1424
        %v1461 = vpack.c.bf16 %v1425, %v1425
        %v1462 = vpack.c.bf16 %v1426, %v1426
        %v1463 = vpack.c.bf16 %v1427, %v1427
        %v1464 = vpack.c.bf16 %v1428, %v1428
        %v1465 = vpack.c.bf16 %v1429, %v1429
        %v1466 = vpack.c.bf16 %v1430, %v1430
        %v1467 = vpack.c.bf16 %v1431, %v1431
        %v1468 = vpack.c.bf16 %v1432, %v1432
        %v1469 = vpack.c.bf16 %v1433, %v1433
        %v1470 = vpack.c.bf16 %v1434, %v1434
        %v1471 = vpack.c.bf16 %v1435, %v1435
        %v1472 = vpack.c.bf16 %v1436, %v1436
        %v1473 = vpack.c.bf16 %v1437, %v1437
        %v1474 = vpack.c.bf16 %v1438, %v1438
        %v1475 = vpack.c.bf16 %v1439, %v1439
        %v1476 = vpack.c.bf16 %v1440, %v1440
        %v1477 = vpack.c.bf16 %v1441, %v1441
        %v1478 = vpack.c.bf16 %v1442, %v1442
        %v1479 = vpack.c.bf16 %v1443, %v1443
        %v1480 = vpack.c.bf16 %v1444, %v1444
        %v1481 = vpack.c.bf16 %v1445, %v1445
        %v1482 = vpack.c.bf16 %v1446, %v1446
        %v1483 = vpack.c.bf16 %v1447, %v1447
        %v1484 = vpack.c.bf16 %v1448, %v1448
        %v1485 = vpack.c.bf16 %v1449, %v1449
        %v1486 = vld [vmem:[%s3] sm:$0xf]
        %v1487 = vld [vmem:[%s3 + $0x4] sm:$0xf]
        %v1488 = vld [vmem:[%s3 + $0x8] sm:$0xf]
        %v1489 = vld [vmem:[%s3 + $0xc] sm:$0xf]
        %v1490 = vld [vmem:[%s3 + $0x10] sm:$0xf]
        %v1491 = vld [vmem:[%s3 + $0x14] sm:$0xf]
        %v1492 = vld [vmem:[%s3 + $0x18] sm:$0xf]
        %v1493 = vld [vmem:[%s3 + $0x1c] sm:$0xf]
        %v1494 = vld [vmem:[%s3 + $0x20] sm:$0xf]
        %v1495 = vld [vmem:[%s3 + $0x24] sm:$0xf]
        %v1496 = vld [vmem:[%s3 + $0x28] sm:$0xf]
        %v1497 = vld [vmem:[%s3 + $0x2c] sm:$0xf]
        %s1498 = scalar_lea.vmem %s3, 48
        %v1499 = vld [vmem:[%s1498] sm:$0xf]
        %v1500 = vld [vmem:[%s1498 + $0x4] sm:$0xf]
        %v1501 = vld [vmem:[%s1498 + $0x8] sm:$0xf]
        %v1502 = vld [vmem:[%s1498 + $0xc] sm:$0xf]
        %v1503 = vld [vmem:[%s1498 + $0x10] sm:$0xf]
        %v1504 = vld [vmem:[%s1498 + $0x14] sm:$0xf]
        %v1505 = vld [vmem:[%s1498 + $0x18] sm:$0xf]
        %v1506 = vld [vmem:[%s1498 + $0x1c] sm:$0xf]
        %v1507 = vld [vmem:[%s1498 + $0x20] sm:$0xf]
        %v1508 = vld [vmem:[%s1498 + $0x24] sm:$0xf]
        %v1509 = vld [vmem:[%s1498 + $0x28] sm:$0xf]
        %v1510 = vld [vmem:[%s1498 + $0x2c] sm:$0xf]
        %v1543 = vunpack.c.l.b16 %v1452
        %v1544 = vunpack.c.l.b16 %v1453
        %v1545 = vunpack.c.l.b16 %v1454
        %v1546 = vunpack.c.l.b16 %v1455
        %v1547 = vunpack.c.l.b16 %v1456
        %v1548 = vunpack.c.l.b16 %v1457
        %v1549 = vunpack.c.l.b16 %v1458
        %v1550 = vunpack.c.l.b16 %v1459
        %v1551 = vunpack.c.l.b16 %v1460
        %v1552 = vunpack.c.l.b16 %v1461
        %v1553 = vunpack.c.l.b16 %v1462
        %v1554 = vunpack.c.l.b16 %v1463
        %v1555 = vunpack.c.l.b16 %v1464
        %v1556 = vunpack.c.l.b16 %v1465
        %v1557 = vunpack.c.l.b16 %v1466
        %v1558 = vunpack.c.l.b16 %v1467
        %v1559 = vunpack.c.l.b16 %v1468
        %v1560 = vunpack.c.l.b16 %v1469
        %v1561 = vunpack.c.l.b16 %v1470
        %v1562 = vunpack.c.l.b16 %v1471
        %v1563 = vunpack.c.l.b16 %v1472
        %v1564 = vunpack.c.l.b16 %v1473
        %v1565 = vunpack.c.l.b16 %v1474
        %v1566 = vunpack.c.l.b16 %v1475
        %v1567 = vunpack.c.l.b16 %v1476
        %v1568 = vunpack.c.l.b16 %v1477
        %v1569 = vunpack.c.l.b16 %v1478
        %v1570 = vunpack.c.l.b16 %v1479
        %v1571 = vunpack.c.l.b16 %v1480
        %v1572 = vunpack.c.l.b16 %v1481
        %v1573 = vunpack.c.l.b16 %v1482
        %v1574 = vunpack.c.l.b16 %v1483
        %v1575 = vpack.c.b16 %v1544, %v1543
        %v1576 = vpack.c.b16 %v1546, %v1545
        %v1577 = vpack.c.b16 %v1548, %v1547
        %v1578 = vpack.c.b16 %v1550, %v1549
        %v1579 = vpack.c.b16 %v1552, %v1551
        %v1580 = vpack.c.b16 %v1554, %v1553
        %v1581 = vpack.c.b16 %v1556, %v1555
        %v1582 = vpack.c.b16 %v1558, %v1557
        %v1583 = vpack.c.b16 %v1560, %v1559
        %v1584 = vpack.c.b16 %v1562, %v1561
        %v1585 = vpack.c.b16 %v1564, %v1563
        %v1586 = vpack.c.b16 %v1566, %v1565
        %v1587 = vpack.c.b16 %v1568, %v1567
        %v1588 = vpack.c.b16 %v1570, %v1569
        %v1589 = vpack.c.b16 %v1572, %v1571
        %v1590 = vpack.c.b16 %v1574, %v1573
        %v1603 = vunpack.c.l.b16 %v1499
        %v1604 = vunpack.c.l.b16 %v1500
        %v1605 = vunpack.c.l.b16 %v1501
        %v1606 = vunpack.c.l.b16 %v1502
        %v1607 = vunpack.c.l.b16 %v1503
        %v1608 = vunpack.c.l.b16 %v1504
        %v1609 = vunpack.c.l.b16 %v1505
        %v1610 = vunpack.c.l.b16 %v1506
        %v1611 = vunpack.c.l.b16 %v1507
        %v1612 = vunpack.c.l.b16 %v1508
        %v1613 = vunpack.c.l.b16 %v1509
        %v1614 = vunpack.c.l.b16 %v1510
        %v1615 = vpack.c.b16 %v1604, %v1603
        %v1616 = vpack.c.b16 %v1606, %v1605
        %v1617 = vpack.c.b16 %v1608, %v1607
        %v1618 = vpack.c.b16 %v1610, %v1609
        %v1619 = vpack.c.b16 %v1612, %v1611
        %v1620 = vpack.c.b16 %v1614, %v1613
        %vm1627 = vcmask 785408
        %v1629 = vsel %vm1627, %v1575, 0
        %v1632 = vsel %vm1627, %v1576, 0
        %v1635 = vsel %vm1627, %v1577, 0
        %v1638 = vsel %vm1627, %v1578, 0
        %v1641 = vsel %vm1627, %v1579, 0
        %v1644 = vsel %vm1627, %v1580, 0
        %v1647 = vsel %vm1627, %v1581, 0
        %v1650 = vsel %vm1627, %v1582, 0
        %v1653 = vsel %vm1627, %v1583, 0
        %v1656 = vsel %vm1627, %v1584, 0
        %v1659 = vsel %vm1627, %v1585, 0
        %v1662 = vsel %vm1627, %v1586, 0
        %v1665 = vsel %vm1627, %v1587, 0
        %v1668 = vsel %vm1627, %v1588, 0
        %v1671 = vsel %vm1627, %v1589, 0
        %v1674 = vsel %vm1627, %v1590, 0
        %1676 = vmatpush.bf16.msra.mxu0 0
        %1677 = vmatpush.bf16.msra.mxu0 0
        %1678 = vmatpush.bf16.msra.mxu0 %v1620
        %1679 = vmatpush.bf16.msra.mxu0 %v1619
        %1680 = vmatpush.bf16.msra.mxu0 %v1618
        %1681 = vmatpush.bf16.msra.mxu0 %v1617
        %1682 = vmatpush.bf16.msra.mxu0 %v1616
        %1683 = vmatpush.bf16.msra.mxu0 %v1615
        %1684 = vmatmul.bf16.gmra.mxu0 %v1629
        %v1685 = vpop.f32.mrf.mxu0
        %v1686 = vadd.f32 0.0, %v1685
        %v1687 = vpop.f32.mrf.mxu0
        %v1688 = vadd.f32 0.0, %v1687
        %1689 = vmatmul.bf16.gmra.mxu0 %v1632
        %v1690 = vpop.f32.mrf.mxu0
        %v1691 = vadd.f32 0.0, %v1690
        %v1692 = vpop.f32.mrf.mxu0
        %v1693 = vadd.f32 0.0, %v1692
        %1694 = vmatmul.bf16.gmra.mxu0 %v1635
        %v1695 = vpop.f32.mrf.mxu0
        %v1696 = vadd.f32 0.0, %v1695
        %v1697 = vpop.f32.mrf.mxu0
        %v1698 = vadd.f32 0.0, %v1697
        %1699 = vmatmul.bf16.gmra.mxu0 %v1638
        %v1700 = vpop.f32.mrf.mxu0
        %v1701 = vadd.f32 0.0, %v1700
        %v1702 = vpop.f32.mrf.mxu0
        %v1703 = vadd.f32 0.0, %v1702
        %1704 = vmatmul.bf16.gmra.mxu0 %v1641
        %v1705 = vpop.f32.mrf.mxu0
        %v1706 = vadd.f32 0.0, %v1705
        %v1707 = vpop.f32.mrf.mxu0
        %v1708 = vadd.f32 0.0, %v1707
        %1709 = vmatmul.bf16.gmra.mxu0 %v1644
        %v1710 = vpop.f32.mrf.mxu0
        %v1711 = vadd.f32 0.0, %v1710
        %v1712 = vpop.f32.mrf.mxu0
        %v1713 = vadd.f32 0.0, %v1712
        %1714 = vmatmul.bf16.gmra.mxu0 %v1647
        %v1715 = vpop.f32.mrf.mxu0
        %v1716 = vadd.f32 0.0, %v1715
        %v1717 = vpop.f32.mrf.mxu0
        %v1718 = vadd.f32 0.0, %v1717
        %1719 = vmatmul.bf16.gmra.mxu0 %v1650
        %v1720 = vpop.f32.mrf.mxu0
        %v1721 = vadd.f32 0.0, %v1720
        %v1722 = vpop.f32.mrf.mxu0
        %v1723 = vadd.f32 0.0, %v1722
        %1724 = vmatmul.bf16.gmra.mxu0 %v1653
        %v1725 = vpop.f32.mrf.mxu0
        %v1726 = vadd.f32 0.0, %v1725
        %v1727 = vpop.f32.mrf.mxu0
        %v1728 = vadd.f32 0.0, %v1727
        %1729 = vmatmul.bf16.gmra.mxu0 %v1656
        %v1730 = vpop.f32.mrf.mxu0
        %v1731 = vadd.f32 0.0, %v1730
        %v1732 = vpop.f32.mrf.mxu0
        %v1733 = vadd.f32 0.0, %v1732
        %1734 = vmatmul.bf16.gmra.mxu0 %v1659
        %v1735 = vpop.f32.mrf.mxu0
        %v1736 = vadd.f32 0.0, %v1735
        %v1737 = vpop.f32.mrf.mxu0
        %v1738 = vadd.f32 0.0, %v1737
        %1739 = vmatmul.bf16.gmra.mxu0 %v1662
        %v1740 = vpop.f32.mrf.mxu0
        %v1741 = vadd.f32 0.0, %v1740
        %v1742 = vpop.f32.mrf.mxu0
        %v1743 = vadd.f32 0.0, %v1742
        %1744 = vmatmul.bf16.gmra.mxu0 %v1665
        %v1745 = vpop.f32.mrf.mxu0
        %v1746 = vadd.f32 0.0, %v1745
        %v1747 = vpop.f32.mrf.mxu0
        %v1748 = vadd.f32 0.0, %v1747
        %1749 = vmatmul.bf16.gmra.mxu0 %v1668
        %v1750 = vpop.f32.mrf.mxu0
        %v1751 = vadd.f32 0.0, %v1750
        %v1752 = vpop.f32.mrf.mxu0
        %v1753 = vadd.f32 0.0, %v1752
        %1754 = vmatmul.bf16.gmra.mxu0 %v1671
        %v1755 = vpop.f32.mrf.mxu0
        %v1756 = vadd.f32 0.0, %v1755
        %v1757 = vpop.f32.mrf.mxu0
        %v1758 = vadd.f32 0.0, %v1757
        %1759 = vmatmul.bf16.gmra.mxu0 %v1674
        %v1760 = vpop.f32.mrf.mxu0
        %v1761 = vadd.f32 0.0, %v1760
        %v1762 = vpop.f32.mrf.mxu0
        %v1763 = vadd.f32 0.0, %v1762
        %1764 = vdwg.mxu0
        %v1767 = vunpack.c.l.b16 %v1450
        %v1768 = vunpack.c.l.b16 %v1451
        %v1769 = vpack.c.b16 %v1768, %v1767
        %v1782 = vunpack.c.l.b16 %v1486
        %v1783 = vunpack.c.l.b16 %v1487
        %v1784 = vunpack.c.l.b16 %v1488
        %v1785 = vunpack.c.l.b16 %v1489
        %v1786 = vunpack.c.l.b16 %v1490
        %v1787 = vunpack.c.l.b16 %v1491
        %v1788 = vunpack.c.l.b16 %v1492
        %v1789 = vunpack.c.l.b16 %v1493
        %v1790 = vunpack.c.l.b16 %v1494
        %v1791 = vunpack.c.l.b16 %v1495
        %v1792 = vunpack.c.l.b16 %v1496
        %v1793 = vunpack.c.l.b16 %v1497
        %v1794 = vpack.c.b16 %v1783, %v1782
        %v1795 = vpack.c.b16 %v1785, %v1784
        %v1796 = vpack.c.b16 %v1787, %v1786
        %v1797 = vpack.c.b16 %v1789, %v1788
        %v1798 = vpack.c.b16 %v1791, %v1790
        %v1799 = vpack.c.b16 %v1793, %v1792
        %v1807 = vsel %vm1627, %v1769, 0
        %1809 = vmatpush.bf16.msra.mxu0 0
        %1810 = vmatpush.bf16.msra.mxu0 0
        %1811 = vmatpush.bf16.msra.mxu0 %v1799
        %1812 = vmatpush.bf16.msra.mxu0 %v1798
        %1813 = vmatpush.bf16.msra.mxu0 %v1797
        %1814 = vmatpush.bf16.msra.mxu0 %v1796
        %1815 = vmatpush.bf16.msra.mxu0 %v1795
        %1816 = vmatpush.bf16.msra.mxu0 %v1794
        %1817 = vmatmul.bf16.gmra.mxu0 %v1807
        %v1818 = vpop.f32.mrf.mxu0
        %v1819 = vadd.f32 %v1686, %v1818
        %v1820 = vpop.f32.mrf.mxu0
        %v1821 = vadd.f32 %v1688, %v1820
        %1822 = vmatmul.bf16.gmra.mxu0 %v1629
        %v1823 = vpop.f32.mrf.mxu0
        %v1824 = vadd.f32 %v1691, %v1823
        %v1825 = vpop.f32.mrf.mxu0
        %v1826 = vadd.f32 %v1693, %v1825
        %1827 = vmatmul.bf16.gmra.mxu0 %v1632
        %v1828 = vpop.f32.mrf.mxu0
        %v1829 = vadd.f32 %v1696, %v1828
        %v1830 = vpop.f32.mrf.mxu0
        %v1831 = vadd.f32 %v1698, %v1830
        %1832 = vmatmul.bf16.gmra.mxu0 %v1635
        %v1833 = vpop.f32.mrf.mxu0
        %v1834 = vadd.f32 %v1701, %v1833
        %v1835 = vpop.f32.mrf.mxu0
        %v1836 = vadd.f32 %v1703, %v1835
        %1837 = vmatmul.bf16.gmra.mxu0 %v1638
        %v1838 = vpop.f32.mrf.mxu0
        %v1839 = vadd.f32 %v1706, %v1838
        %v1840 = vpop.f32.mrf.mxu0
        %v1841 = vadd.f32 %v1708, %v1840
        %1842 = vmatmul.bf16.gmra.mxu0 %v1641
        %v1843 = vpop.f32.mrf.mxu0
        %v1844 = vadd.f32 %v1711, %v1843
        %v1845 = vpop.f32.mrf.mxu0
        %v1846 = vadd.f32 %v1713, %v1845
        %1847 = vmatmul.bf16.gmra.mxu0 %v1644
        %v1848 = vpop.f32.mrf.mxu0
        %v1849 = vadd.f32 %v1716, %v1848
        %v1850 = vpop.f32.mrf.mxu0
        %v1851 = vadd.f32 %v1718, %v1850
        %1852 = vmatmul.bf16.gmra.mxu0 %v1647
        %v1853 = vpop.f32.mrf.mxu0
        %v1854 = vadd.f32 %v1721, %v1853
        %v1855 = vpop.f32.mrf.mxu0
        %v1856 = vadd.f32 %v1723, %v1855
        %1857 = vmatmul.bf16.gmra.mxu0 %v1650
        %v1858 = vpop.f32.mrf.mxu0
        %v1859 = vadd.f32 %v1726, %v1858
        %v1860 = vpop.f32.mrf.mxu0
        %v1861 = vadd.f32 %v1728, %v1860
        %1862 = vmatmul.bf16.gmra.mxu0 %v1653
        %v1863 = vpop.f32.mrf.mxu0
        %v1864 = vadd.f32 %v1731, %v1863
        %v1865 = vpop.f32.mrf.mxu0
        %v1866 = vadd.f32 %v1733, %v1865
        %1867 = vmatmul.bf16.gmra.mxu0 %v1656
        %v1868 = vpop.f32.mrf.mxu0
        %v1869 = vadd.f32 %v1736, %v1868
        %v1870 = vpop.f32.mrf.mxu0
        %v1871 = vadd.f32 %v1738, %v1870
        %1872 = vmatmul.bf16.gmra.mxu0 %v1659
        %v1873 = vpop.f32.mrf.mxu0
        %v1874 = vadd.f32 %v1741, %v1873
        %v1875 = vpop.f32.mrf.mxu0
        %v1876 = vadd.f32 %v1743, %v1875
        %1877 = vmatmul.bf16.gmra.mxu0 %v1662
        %v1878 = vpop.f32.mrf.mxu0
        %v1879 = vadd.f32 %v1746, %v1878
        %v1880 = vpop.f32.mrf.mxu0
        %v1881 = vadd.f32 %v1748, %v1880
        %1882 = vmatmul.bf16.gmra.mxu0 %v1665
        %v1883 = vpop.f32.mrf.mxu0
        %v1884 = vadd.f32 %v1751, %v1883
        %v1885 = vpop.f32.mrf.mxu0
        %v1886 = vadd.f32 %v1753, %v1885
        %1887 = vmatmul.bf16.gmra.mxu0 %v1668
        %v1888 = vpop.f32.mrf.mxu0
        %v1889 = vadd.f32 %v1756, %v1888
        %v1890 = vpop.f32.mrf.mxu0
        %v1891 = vadd.f32 %v1758, %v1890
        %1892 = vmatmul.bf16.gmra.mxu0 %v1671
        %v1893 = vpop.f32.mrf.mxu0
        %v1894 = vadd.f32 %v1761, %v1893
        %v1895 = vpop.f32.mrf.mxu0
        %v1896 = vadd.f32 %v1763, %v1895
        %1897 = vdwg.mxu0
        %s1898 = scalar_lea.vmem %s3, 96
        %v1899 = vld [vmem:[%s1898] sm:$0xf]
        %v1900 = vld [vmem:[%s1898 + $0x4] sm:$0xf]
        %v1901 = vld [vmem:[%s1898 + $0x8] sm:$0xf]
        %v1902 = vld [vmem:[%s1898 + $0xc] sm:$0xf]
        %v1903 = vld [vmem:[%s1898 + $0x10] sm:$0xf]
        %v1904 = vld [vmem:[%s1898 + $0x14] sm:$0xf]
        %v1905 = vld [vmem:[%s1898 + $0x18] sm:$0xf]
        %v1906 = vld [vmem:[%s1898 + $0x1c] sm:$0xf]
        %v1907 = vld [vmem:[%s1898 + $0x20] sm:$0xf]
        %v1908 = vld [vmem:[%s1898 + $0x24] sm:$0xf]
        %v1909 = vld [vmem:[%s1898 + $0x28] sm:$0xf]
        %v1910 = vld [vmem:[%s1898 + $0x2c] sm:$0xf]
        %v1913 = vunpack.c.l.b16 %v1484
        %v1914 = vunpack.c.l.b16 %v1485
        %v1915 = vpack.c.b16 %v1914, %v1913
        %v1928 = vunpack.c.l.b16 %v1899
        %v1929 = vunpack.c.l.b16 %v1900
        %v1930 = vunpack.c.l.b16 %v1901
        %v1931 = vunpack.c.l.b16 %v1902
        %v1932 = vunpack.c.l.b16 %v1903
        %v1933 = vunpack.c.l.b16 %v1904
        %v1934 = vunpack.c.l.b16 %v1905
        %v1935 = vunpack.c.l.b16 %v1906
        %v1936 = vunpack.c.l.b16 %v1907
        %v1937 = vunpack.c.l.b16 %v1908
        %v1938 = vunpack.c.l.b16 %v1909
        %v1939 = vunpack.c.l.b16 %v1910
        %v1940 = vpack.c.b16 %v1929, %v1928
        %v1941 = vpack.c.b16 %v1931, %v1930
        %v1942 = vpack.c.b16 %v1933, %v1932
        %v1943 = vpack.c.b16 %v1935, %v1934
        %v1944 = vpack.c.b16 %v1937, %v1936
        %v1945 = vpack.c.b16 %v1939, %v1938
        %v1953 = vsel %vm1627, %v1915, 0
        %1955 = vmatpush.bf16.msra.mxu0 0
        %1956 = vmatpush.bf16.msra.mxu0 0
        %1957 = vmatpush.bf16.msra.mxu0 %v1945
        %1958 = vmatpush.bf16.msra.mxu0 %v1944
        %1959 = vmatpush.bf16.msra.mxu0 %v1943
        %1960 = vmatpush.bf16.msra.mxu0 %v1942
        %1961 = vmatpush.bf16.msra.mxu0 %v1941
        %1962 = vmatpush.bf16.msra.mxu0 %v1940
        %1963 = vmatmul.bf16.gmra.mxu0 %v1632
        %v1964 = vpop.f32.mrf.mxu0
        %v1965 = vadd.f32 0.0, %v1964
        %v1966 = vpop.f32.mrf.mxu0
        %v1967 = vadd.f32 0.0, %v1966
        %1968 = vmatmul.bf16.gmra.mxu0 %v1635
        %v1969 = vpop.f32.mrf.mxu0
        %v1970 = vadd.f32 0.0, %v1969
        %v1971 = vpop.f32.mrf.mxu0
        %v1972 = vadd.f32 0.0, %v1971
        %1973 = vmatmul.bf16.gmra.mxu0 %v1638
        %v1974 = vpop.f32.mrf.mxu0
        %v1975 = vadd.f32 0.0, %v1974
        %v1976 = vpop.f32.mrf.mxu0
        %v1977 = vadd.f32 0.0, %v1976
        %1978 = vmatmul.bf16.gmra.mxu0 %v1641
        %v1979 = vpop.f32.mrf.mxu0
        %v1980 = vadd.f32 0.0, %v1979
        %v1981 = vpop.f32.mrf.mxu0
        %v1982 = vadd.f32 0.0, %v1981
        %1983 = vmatmul.bf16.gmra.mxu0 %v1644
        %v1984 = vpop.f32.mrf.mxu0
        %v1985 = vadd.f32 0.0, %v1984
        %v1986 = vpop.f32.mrf.mxu0
        %v1987 = vadd.f32 0.0, %v1986
        %1988 = vmatmul.bf16.gmra.mxu0 %v1647
        %v1989 = vpop.f32.mrf.mxu0
        %v1990 = vadd.f32 0.0, %v1989
        %v1991 = vpop.f32.mrf.mxu0
        %v1992 = vadd.f32 0.0, %v1991
        %1993 = vmatmul.bf16.gmra.mxu0 %v1650
        %v1994 = vpop.f32.mrf.mxu0
        %v1995 = vadd.f32 0.0, %v1994
        %v1996 = vpop.f32.mrf.mxu0
        %v1997 = vadd.f32 0.0, %v1996
        %1998 = vmatmul.bf16.gmra.mxu0 %v1653
        %v1999 = vpop.f32.mrf.mxu0
        %v2000 = vadd.f32 0.0, %v1999
        %v2001 = vpop.f32.mrf.mxu0
        %v2002 = vadd.f32 0.0, %v2001
        %2003 = vmatmul.bf16.gmra.mxu0 %v1656
        %v2004 = vpop.f32.mrf.mxu0
        %v2005 = vadd.f32 0.0, %v2004
        %v2006 = vpop.f32.mrf.mxu0
        %v2007 = vadd.f32 0.0, %v2006
        %2008 = vmatmul.bf16.gmra.mxu0 %v1659
        %v2009 = vpop.f32.mrf.mxu0
        %v2010 = vadd.f32 0.0, %v2009
        %v2011 = vpop.f32.mrf.mxu0
        %v2012 = vadd.f32 0.0, %v2011
        %2013 = vmatmul.bf16.gmra.mxu0 %v1662
        %v2014 = vpop.f32.mrf.mxu0
        %v2015 = vadd.f32 0.0, %v2014
        %v2016 = vpop.f32.mrf.mxu0
        %v2017 = vadd.f32 0.0, %v2016
        %2018 = vmatmul.bf16.gmra.mxu0 %v1665
        %v2019 = vpop.f32.mrf.mxu0
        %v2020 = vadd.f32 0.0, %v2019
        %v2021 = vpop.f32.mrf.mxu0
        %v2022 = vadd.f32 0.0, %v2021
        %2023 = vmatmul.bf16.gmra.mxu0 %v1668
        %v2024 = vpop.f32.mrf.mxu0
        %v2025 = vadd.f32 0.0, %v2024
        %v2026 = vpop.f32.mrf.mxu0
        %v2027 = vadd.f32 0.0, %v2026
        %2028 = vmatmul.bf16.gmra.mxu0 %v1671
        %v2029 = vpop.f32.mrf.mxu0
        %v2030 = vadd.f32 0.0, %v2029
        %v2031 = vpop.f32.mrf.mxu0
        %v2032 = vadd.f32 0.0, %v2031
        %2033 = vmatmul.bf16.gmra.mxu0 %v1674
        %v2034 = vpop.f32.mrf.mxu0
        %v2035 = vadd.f32 0.0, %v2034
        %v2036 = vpop.f32.mrf.mxu0
        %v2037 = vadd.f32 0.0, %v2036
        %2038 = vmatmul.bf16.gmra.mxu0 %v1953
        %v2039 = vpop.f32.mrf.mxu0
        %v2040 = vadd.f32 0.0, %v2039
        %v2041 = vpop.f32.mrf.mxu0
        %v2042 = vadd.f32 0.0, %v2041
        %2043 = vdwg.mxu0
        %v2044 = vadd.f32 %v1819, %v1965
        %v2045 = vadd.f32 %v1821, %v1967
        %v2046 = vadd.f32 %v1824, %v1970
        %v2047 = vadd.f32 %v1826, %v1972
        %v2048 = vadd.f32 %v1829, %v1975
        %v2049 = vadd.f32 %v1831, %v1977
        %v2050 = vadd.f32 %v1834, %v1980
        %v2051 = vadd.f32 %v1836, %v1982
        %v2052 = vadd.f32 %v1839, %v1985
        %v2053 = vadd.f32 %v1841, %v1987
        %v2054 = vadd.f32 %v1844, %v1990
        %v2055 = vadd.f32 %v1846, %v1992
        %v2056 = vadd.f32 %v1849, %v1995
        %v2057 = vadd.f32 %v1851, %v1997
        %v2058 = vadd.f32 %v1854, %v2000
        %v2059 = vadd.f32 %v1856, %v2002
        %v2060 = vadd.f32 %v1859, %v2005
        %v2061 = vadd.f32 %v1861, %v2007
        %v2062 = vadd.f32 %v1864, %v2010
        %v2063 = vadd.f32 %v1866, %v2012
        %v2064 = vadd.f32 %v1869, %v2015
        %v2065 = vadd.f32 %v1871, %v2017
        %v2066 = vadd.f32 %v1874, %v2020
        %v2067 = vadd.f32 %v1876, %v2022
        %v2068 = vadd.f32 %v1879, %v2025
        %v2069 = vadd.f32 %v1881, %v2027
        %v2070 = vadd.f32 %v1884, %v2030
        %v2071 = vadd.f32 %v1886, %v2032
        %v2072 = vadd.f32 %v1889, %v2035
        %v2073 = vadd.f32 %v1891, %v2037
        %v2074 = vadd.f32 %v1894, %v2040
        %v2075 = vadd.f32 %v1896, %v2042
        %v2076 = vld [vmem:[%s4] sm:$0x1]
        %v2078 = vperm.slane %v2076, 0
        %v2080 = vadd.f32 %v2044, %v2078
        %v2081 = vadd.f32 %v2045, %v2078
        %v2082 = vadd.f32 %v2046, %v2078
        %v2083 = vadd.f32 %v2047, %v2078
        %v2084 = vadd.f32 %v2048, %v2078
        %v2085 = vadd.f32 %v2049, %v2078
        %v2086 = vadd.f32 %v2050, %v2078
        %v2087 = vadd.f32 %v2051, %v2078
        %v2088 = vadd.f32 %v2052, %v2078
        %v2089 = vadd.f32 %v2053, %v2078
        %v2090 = vadd.f32 %v2054, %v2078
        %v2091 = vadd.f32 %v2055, %v2078
        %v2092 = vadd.f32 %v2056, %v2078
        %v2093 = vadd.f32 %v2057, %v2078
        %v2094 = vadd.f32 %v2058, %v2078
        %v2095 = vadd.f32 %v2059, %v2078
        %v2096 = vadd.f32 %v2060, %v2078
        %v2097 = vadd.f32 %v2061, %v2078
        %v2098 = vadd.f32 %v2062, %v2078
        %v2099 = vadd.f32 %v2063, %v2078
        %v2100 = vadd.f32 %v2064, %v2078
        %v2101 = vadd.f32 %v2065, %v2078
        %v2102 = vadd.f32 %v2066, %v2078
        %v2103 = vadd.f32 %v2067, %v2078
        %v2104 = vadd.f32 %v2068, %v2078
        %v2105 = vadd.f32 %v2069, %v2078
        %v2106 = vadd.f32 %v2070, %v2078
        %v2107 = vadd.f32 %v2071, %v2078
        %v2108 = vadd.f32 %v2072, %v2078
        %v2109 = vadd.f32 %v2073, %v2078
        %v2110 = vadd.f32 %v2074, %v2078
        %v2111 = vadd.f32 %v2075, %v2078
        %v2112 = vmax.f32 %v2080, 0.0
        %v2113 = vmax.f32 %v2081, 0.0
        %v2114 = vmax.f32 %v2082, 0.0
        %v2115 = vmax.f32 %v2083, 0.0
        %v2116 = vmax.f32 %v2084, 0.0
        %v2117 = vmax.f32 %v2085, 0.0
        %v2118 = vmax.f32 %v2086, 0.0
        %v2119 = vmax.f32 %v2087, 0.0
        %v2120 = vmax.f32 %v2088, 0.0
        %v2121 = vmax.f32 %v2089, 0.0
        %v2122 = vmax.f32 %v2090, 0.0
        %v2123 = vmax.f32 %v2091, 0.0
        %v2124 = vmax.f32 %v2092, 0.0
        %v2125 = vmax.f32 %v2093, 0.0
        %v2126 = vmax.f32 %v2094, 0.0
        %v2127 = vmax.f32 %v2095, 0.0
        %v2128 = vmax.f32 %v2096, 0.0
        %v2129 = vmax.f32 %v2097, 0.0
        %v2130 = vmax.f32 %v2098, 0.0
        %v2131 = vmax.f32 %v2099, 0.0
        %v2132 = vmax.f32 %v2100, 0.0
        %v2133 = vmax.f32 %v2101, 0.0
        %v2134 = vmax.f32 %v2102, 0.0
        %v2135 = vmax.f32 %v2103, 0.0
        %v2136 = vmax.f32 %v2104, 0.0
        %v2137 = vmax.f32 %v2105, 0.0
        %v2138 = vmax.f32 %v2106, 0.0
        %v2139 = vmax.f32 %v2107, 0.0
        %v2140 = vmax.f32 %v2108, 0.0
        %v2141 = vmax.f32 %v2109, 0.0
        %v2142 = vmax.f32 %v2110, 0.0
        %v2143 = vmax.f32 %v2111, 0.0
        %v2144 = vpack.c.bf16 %v2113, %v2112
        %v2145 = vpack.c.bf16 %v2115, %v2114
        %v2146 = vpack.c.bf16 %v2117, %v2116
        %v2147 = vpack.c.bf16 %v2119, %v2118
        %v2148 = vpack.c.bf16 %v2121, %v2120
        %v2149 = vpack.c.bf16 %v2123, %v2122
        %v2150 = vpack.c.bf16 %v2125, %v2124
        %v2151 = vpack.c.bf16 %v2127, %v2126
        %v2152 = vpack.c.bf16 %v2129, %v2128
        %v2153 = vpack.c.bf16 %v2131, %v2130
        %v2154 = vpack.c.bf16 %v2133, %v2132
        %v2155 = vpack.c.bf16 %v2135, %v2134
        %v2156 = vpack.c.bf16 %v2137, %v2136
        %v2157 = vpack.c.bf16 %v2139, %v2138
        %v2158 = vpack.c.bf16 %v2141, %v2140
        %v2159 = vpack.c.bf16 %v2143, %v2142
        %v2160 = vld [vmem:[%s5] sm:$0xf]
        %v2161 = vld [vmem:[%s5 + $0x4] sm:$0xf]
        %v2162 = vld [vmem:[%s5 + $0x8] sm:$0xf]
        %v2163 = vld [vmem:[%s5 + $0xc] sm:$0xf]
        %v2164 = vld [vmem:[%s6] sm:$0x1]
        %v2166 = vperm.slane %v2164, 0
        %v2172 = vunpack.c.l.b16 %v2160
        %v2173 = vunpack.c.l.b16 %v2161
        %v2174 = vunpack.c.l.b16 %v2162
        %v2175 = vunpack.c.l.b16 %v2163
        %v2176 = vpack.c.b16 %v2173, %v2172
        %v2177 = vpack.c.b16 %v2175, %v2174
        %v2181 = vsel %vm1376, %v2144, 0
        %v2184 = vsel %vm1376, %v2145, 0
        %v2187 = vsel %vm1376, %v2146, 0
        %v2190 = vsel %vm1376, %v2147, 0
        %v2193 = vsel %vm1376, %v2148, 0
        %v2196 = vsel %vm1376, %v2149, 0
        %v2199 = vsel %vm1376, %v2150, 0
        %v2202 = vsel %vm1376, %v2151, 0
        %v2205 = vsel %vm1376, %v2152, 0
        %v2208 = vsel %vm1376, %v2153, 0
        %v2211 = vsel %vm1376, %v2154, 0
        %v2214 = vsel %vm1376, %v2155, 0
        %v2217 = vsel %vm1376, %v2156, 0
        %v2220 = vsel %vm1376, %v2157, 0
        %v2223 = vsel %vm1376, %v2158, 0
        %v2226 = vsel %vm1376, %v2159, 0
        %2228 = vmatpush.bf16.msra.mxu0 0
        %2229 = vmatpush.bf16.msra.mxu0 0
        %2230 = vmatpush.bf16.msra.mxu0 0
        %2231 = vmatpush.bf16.msra.mxu0 0
        %2232 = vmatpush.bf16.msra.mxu0 0
        %2233 = vmatpush.bf16.msra.mxu0 0
        %2234 = vmatpush.bf16.msra.mxu0 %v2177
        %2235 = vmatpush.bf16.msra.mxu0 %v2176
        %2236 = vmatmul.bf16.gmra.mxu0 %v2181
        %v2237 = vpop.f32.mrf.mxu0
        %v2238 = vadd.f32 %v2166, %v2237
        %v2239 = vpop.f32.mrf.mxu0
        %v2240 = vadd.f32 %v2166, %v2239
        %2241 = vmatmul.bf16.gmra.mxu0 %v2184
        %v2242 = vpop.f32.mrf.mxu0
        %v2243 = vadd.f32 %v2166, %v2242
        %v2244 = vpop.f32.mrf.mxu0
        %v2245 = vadd.f32 %v2166, %v2244
        %2246 = vmatmul.bf16.gmra.mxu0 %v2187
        %v2247 = vpop.f32.mrf.mxu0
        %v2248 = vadd.f32 %v2166, %v2247
        %v2249 = vpop.f32.mrf.mxu0
        %v2250 = vadd.f32 %v2166, %v2249
        %2251 = vmatmul.bf16.gmra.mxu0 %v2190
        %v2252 = vpop.f32.mrf.mxu0
        %v2253 = vadd.f32 %v2166, %v2252
        %v2254 = vpop.f32.mrf.mxu0
        %v2255 = vadd.f32 %v2166, %v2254
        %2256 = vmatmul.bf16.gmra.mxu0 %v2193
        %v2257 = vpop.f32.mrf.mxu0
        %v2258 = vadd.f32 %v2166, %v2257
        %v2259 = vpop.f32.mrf.mxu0
        %v2260 = vadd.f32 %v2166, %v2259
        %2261 = vmatmul.bf16.gmra.mxu0 %v2196
        %v2262 = vpop.f32.mrf.mxu0
        %v2263 = vadd.f32 %v2166, %v2262
        %v2264 = vpop.f32.mrf.mxu0
        %v2265 = vadd.f32 %v2166, %v2264
        %2266 = vmatmul.bf16.gmra.mxu0 %v2199
        %v2267 = vpop.f32.mrf.mxu0
        %v2268 = vadd.f32 %v2166, %v2267
        %v2269 = vpop.f32.mrf.mxu0
        %v2270 = vadd.f32 %v2166, %v2269
        %2271 = vmatmul.bf16.gmra.mxu0 %v2202
        %v2272 = vpop.f32.mrf.mxu0
        %v2273 = vadd.f32 %v2166, %v2272
        %v2274 = vpop.f32.mrf.mxu0
        %v2275 = vadd.f32 %v2166, %v2274
        %2276 = vmatmul.bf16.gmra.mxu0 %v2205
        %v2277 = vpop.f32.mrf.mxu0
        %v2278 = vadd.f32 %v2166, %v2277
        %v2279 = vpop.f32.mrf.mxu0
        %v2280 = vadd.f32 %v2166, %v2279
        %2281 = vmatmul.bf16.gmra.mxu0 %v2208
        %v2282 = vpop.f32.mrf.mxu0
        %v2283 = vadd.f32 %v2166, %v2282
        %v2284 = vpop.f32.mrf.mxu0
        %v2285 = vadd.f32 %v2166, %v2284
        %2286 = vmatmul.bf16.gmra.mxu0 %v2211
        %v2287 = vpop.f32.mrf.mxu0
        %v2288 = vadd.f32 %v2166, %v2287
        %v2289 = vpop.f32.mrf.mxu0
        %v2290 = vadd.f32 %v2166, %v2289
        %2291 = vmatmul.bf16.gmra.mxu0 %v2214
        %v2292 = vpop.f32.mrf.mxu0
        %v2293 = vadd.f32 %v2166, %v2292
        %v2294 = vpop.f32.mrf.mxu0
        %v2295 = vadd.f32 %v2166, %v2294
        %2296 = vmatmul.bf16.gmra.mxu0 %v2217
        %v2297 = vpop.f32.mrf.mxu0
        %v2298 = vadd.f32 %v2166, %v2297
        %v2299 = vpop.f32.mrf.mxu0
        %v2300 = vadd.f32 %v2166, %v2299
        %2301 = vmatmul.bf16.gmra.mxu0 %v2220
        %v2302 = vpop.f32.mrf.mxu0
        %v2303 = vadd.f32 %v2166, %v2302
        %v2304 = vpop.f32.mrf.mxu0
        %v2305 = vadd.f32 %v2166, %v2304
        %2306 = vmatmul.bf16.gmra.mxu0 %v2223
        %v2307 = vpop.f32.mrf.mxu0
        %v2308 = vadd.f32 %v2166, %v2307
        %v2309 = vpop.f32.mrf.mxu0
        %v2310 = vadd.f32 %v2166, %v2309
        %2311 = vmatmul.bf16.gmra.mxu0 %v2226
        %v2312 = vpop.f32.mrf.mxu0
        %v2313 = vadd.f32 %v2166, %v2312
        %v2314 = vpop.f32.mrf.mxu0
        %v2315 = vadd.f32 %v2166, %v2314
        %2316 = vdwg.mxu0
        %v2317 = vadd.f32 %v2238, %v330
        %v2318 = vadd.f32 %v2240, %v331
        %v2319 = vadd.f32 %v2243, %v332
        %v2320 = vadd.f32 %v2245, %v333
        %v2321 = vadd.f32 %v2248, %v334
        %v2322 = vadd.f32 %v2250, %v335
        %v2323 = vadd.f32 %v2253, %v336
        %v2324 = vadd.f32 %v2255, %v337
        %v2325 = vadd.f32 %v2258, %v338
        %v2326 = vadd.f32 %v2260, %v339
        %v2327 = vadd.f32 %v2263, %v340
        %v2328 = vadd.f32 %v2265, %v341
        %v2329 = vadd.f32 %v2268, %v342
        %v2330 = vadd.f32 %v2270, %v343
        %v2331 = vadd.f32 %v2273, %v344
        %v2332 = vadd.f32 %v2275, %v345
        %v2333 = vadd.f32 %v2278, %v346
        %v2334 = vadd.f32 %v2280, %v347
        %v2335 = vadd.f32 %v2283, %v348
        %v2336 = vadd.f32 %v2285, %v349
        %v2337 = vadd.f32 %v2288, %v350
        %v2338 = vadd.f32 %v2290, %v351
        %v2339 = vadd.f32 %v2293, %v352
        %v2340 = vadd.f32 %v2295, %v353
        %v2341 = vadd.f32 %v2298, %v354
        %v2342 = vadd.f32 %v2300, %v355
        %v2343 = vadd.f32 %v2303, %v356
        %v2344 = vadd.f32 %v2305, %v357
        %v2345 = vadd.f32 %v2308, %v358
        %v2346 = vadd.f32 %v2310, %v359
        %v2347 = vadd.f32 %v2313, %v360
        %v2348 = vadd.f32 %v2315, %v361
        %v2349 = vmax.f32 %v2317, 0.0
        %v2350 = vmax.f32 %v2318, 0.0
        %v2351 = vmax.f32 %v2319, 0.0
        %v2352 = vmax.f32 %v2320, 0.0
        %v2353 = vmax.f32 %v2321, 0.0
        %v2354 = vmax.f32 %v2322, 0.0
        %v2355 = vmax.f32 %v2323, 0.0
        %v2356 = vmax.f32 %v2324, 0.0
        %v2357 = vmax.f32 %v2325, 0.0
        %v2358 = vmax.f32 %v2326, 0.0
        %v2359 = vmax.f32 %v2327, 0.0
        %v2360 = vmax.f32 %v2328, 0.0
        %v2361 = vmax.f32 %v2329, 0.0
        %v2362 = vmax.f32 %v2330, 0.0
        %v2363 = vmax.f32 %v2331, 0.0
        %v2364 = vmax.f32 %v2332, 0.0
        %v2365 = vmax.f32 %v2333, 0.0
        %v2366 = vmax.f32 %v2334, 0.0
        %v2367 = vmax.f32 %v2335, 0.0
        %v2368 = vmax.f32 %v2336, 0.0
        %v2369 = vmax.f32 %v2337, 0.0
        %v2370 = vmax.f32 %v2338, 0.0
        %v2371 = vmax.f32 %v2339, 0.0
        %v2372 = vmax.f32 %v2340, 0.0
        %v2373 = vmax.f32 %v2341, 0.0
        %v2374 = vmax.f32 %v2342, 0.0
        %v2375 = vmax.f32 %v2343, 0.0
        %v2376 = vmax.f32 %v2344, 0.0
        %v2377 = vmax.f32 %v2345, 0.0
        %v2378 = vmax.f32 %v2346, 0.0
        %v2379 = vmax.f32 %v2347, 0.0
        %v2380 = vmax.f32 %v2348, 0.0
        %2381 = vst [vmem:[%s312] sm:$0xff] %v2349
        %2382 = vst [vmem:[%s312 + $0x8] sm:$0xff] %v2350
        %2383 = vst [vmem:[%s312 + $0x10] sm:$0xff] %v2351
        %2384 = vst [vmem:[%s312 + $0x18] sm:$0xff] %v2352
        %2385 = vst [vmem:[%s312 + $0x20] sm:$0xff] %v2353
        %2386 = vst [vmem:[%s312 + $0x28] sm:$0xff] %v2354
        %2387 = vst [vmem:[%s312 + $0x30] sm:$0xff] %v2355
        %2388 = vst [vmem:[%s312 + $0x38] sm:$0xff] %v2356
        %2389 = vst [vmem:[%s312 + $0x40] sm:$0xff] %v2357
        %2390 = vst [vmem:[%s312 + $0x48] sm:$0xff] %v2358
        %2391 = vst [vmem:[%s312 + $0x50] sm:$0xff] %v2359
        %2392 = vst [vmem:[%s312 + $0x58] sm:$0xff] %v2360
        %2393 = vst [vmem:[%s312 + $0x60] sm:$0xff] %v2361
        %2394 = vst [vmem:[%s312 + $0x68] sm:$0xff] %v2362
        %2395 = vst [vmem:[%s312 + $0x70] sm:$0xff] %v2363
        %2396 = vst [vmem:[%s312 + $0x78] sm:$0xff] %v2364
        %2397 = vst [vmem:[%s312 + $0x80] sm:$0xff] %v2365
        %2398 = vst [vmem:[%s312 + $0x88] sm:$0xff] %v2366
        %2399 = vst [vmem:[%s312 + $0x90] sm:$0xff] %v2367
        %2400 = vst [vmem:[%s312 + $0x98] sm:$0xff] %v2368
        %2401 = vst [vmem:[%s312 + $0xa0] sm:$0xff] %v2369
        %2402 = vst [vmem:[%s312 + $0xa8] sm:$0xff] %v2370
        %2403 = vst [vmem:[%s312 + $0xb0] sm:$0xff] %v2371
        %2404 = vst [vmem:[%s312 + $0xb8] sm:$0xff] %v2372
        %2405 = vst [vmem:[%s312 + $0xc0] sm:$0xff] %v2373
        %2406 = vst [vmem:[%s312 + $0xc8] sm:$0xff] %v2374
        %2407 = vst [vmem:[%s312 + $0xd0] sm:$0xff] %v2375
        %2408 = vst [vmem:[%s312 + $0xd8] sm:$0xff] %v2376
        %2409 = vst [vmem:[%s312 + $0xe0] sm:$0xff] %v2377
        %2410 = vst [vmem:[%s312 + $0xe8] sm:$0xff] %v2378
        %2411 = vst [vmem:[%s312 + $0xf0] sm:$0xff] %v2379
        %2412 = vst [vmem:[%s312 + $0xf8] sm:$0xff] %v2380
        %s2413 = sand.u32 %s198, 1
        %s2414 = scalar_lea.sflag [#allocation4], %s2413
        %s2415 = sand.u32 %s198, 1
        %s2416 = smul.addr %s2415, 256
        %s2417 = scalar_lea.vmem [#allocation5], %s2416
        // Predicated region
        $region53: #{tpu_custom_call.1} parent=47 // pred_check
          %p2418 = pneg %p208
        $region54: #{tpu_custom_call.1} parent=47 // pred_check_branch
          %2420 = sbr.rel (%p2418) target = $region56
        $region55: #{tpu_custom_call.1} parent=47 // pred_region
          %s2421 = smul.u32 16, %s29
          %2423 = vsyncadd %s2414, 0
          %s2424 = smul.addr %s2421, 2
          %s2425 = smul.addr %s28, 64
          %s2426 = sadd.s32 %s2424, %s2425
          %s2427 = smul.addr %s2426, 8
          %s2428 = scalar_lea.hbm %s7, %s2427
          %s2429 = sshll.u32 %s2417, 4
          %s2430 = int_to_ptr.vmem [resolvable:$true] %s2429
          %s2431 = sshll.u32 %s2428, 4
          %s2432 = int_to_ptr.hbm [resolvable:$true] %s2431
          %2437 = dma.vmem_to_hbm [thread:$0]  %s2430, 4096, %s2432, %s2414, 128, 128, 8
        $region56: #{tpu_custom_call.1} parent=47 // pred_fallthru
          _
      $region48: #{tpu_custom_call.1} parent=5 // pred_fallthru
        _
      %p2438 = scmp.le.s32.totalorder 2, %s19
      // Predicated region
      $region57: #{tpu_custom_call.1} parent=5 // pred_check
        %p2439 = pneg %p2438
      $region58: #{tpu_custom_call.1} parent=5 // pred_check_branch
        %2441 = sbr.rel (%p2439) target = $region60
      $region59: #{tpu_custom_call.1} parent=5 // pred_region
        %s2442 = ssub.s32 %s19, 2
        // Predicated region
        $region61: #{tpu_custom_call.1} parent=59 // pred_check
          %p2443 = pneg %p214
        $region62: #{tpu_custom_call.1} parent=59 // pred_check_branch
          %2445 = sbr.rel (%p2443) target = $region64
        $region63: #{tpu_custom_call.1} parent=59 // pred_region
          %s2446 = sand.u32 %s199, 1
          %s2447 = scalar_lea.sflag [#allocation4], %s2446
          %s2448 = sand.u32 %s199, 1
          %s2449 = smul.addr %s2448, 256
          %s2450 = scalar_lea.vmem [#allocation5], %s2449
          %2452 = dma.done %s2447, 4096
        $region64: #{tpu_custom_call.1} parent=59 // pred_fallthru
          _
      $region60: #{tpu_custom_call.1} parent=5 // pred_fallthru
        _
    $region6: #{tpu_custom_call.1} parent=1 // loop_footer
      %s23 = sadd.s32 1, %s19
    $region7: #{tpu_custom_call.1} parent=1 // loop_footer_branch
      %18 = sbr.rel target = $region3
    $region8: #{tpu_custom_call.1} parent=1 // loop_exit
      _
    %2453 = vsyncpa [#allocation3], 1
    %s2454 = scalar_lea.sflag [#allocation3], 1
    %2455 = vsyncpa %s2454, 1
    %2456 = vsyncpa [#allocation4], 1
    %s2457 = scalar_lea.sflag [#allocation4], 1
    %2458 = vsyncpa %s2457, 1

</llo_original>
